<compile_context>
chip_gen: v6e
topology: v6e:2x2x1
jax: 0.10.0
libtpu: 0.0.40
codegen_flags: <defaults>
</compile_context>

<pallas_src>
import jax
import jax.numpy as jnp
from jax.experimental import pallas as pl
from jax.experimental.pallas import tpu as pltpu


# ----------------------------------------------------------------------------
# Fused kernel: wavefront-interleaved 3-layer LSTM + head, all in VMEM.
# ----------------------------------------------------------------------------
def _make_fused_kernel(T, Bp, D, H, F1):
    f32 = jnp.float32
    bf16 = jnp.bfloat16

    def lstm_cell(g, c_prev):
        # g: (Bp, 4H) f32 pre-activation gates (order i, f, g, o).
        sig = jax.nn.sigmoid(g)          # full-tile EUP op
        th = jnp.tanh(g)                 # full-tile EUP op
        i_g = sig[:, 0:H]
        f_g = sig[:, H:2 * H]
        g_g = th[:, 2 * H:3 * H]
        o_g = sig[:, 3 * H:4 * H]
        c = f_g * c_prev + i_g * g_g
        h = o_g * jnp.tanh(c)
        return h, c

    def kernel(x_ref, wl_ref, bl_ref, wh_ref, bh_ref, out_ref):
        # ---- static slices of the packed LSTM weight slab (bf16) ----
        wih0 = wl_ref[0:D, :]                        # (D, 4H)
        whh0 = wl_ref[D:D + H, :]                    # (H, 4H)
        wslab1 = wl_ref[D + H:D + 3 * H, :]          # (2H, 4H) = [W_ih1; W_hh1]
        wslab2 = wl_ref[D + 3 * H:D + 5 * H, :]      # (2H, 4H) = [W_ih2; W_hh2]
        b0 = bl_ref[0:1, :]                          # (1, 4H) f32
        b1 = bl_ref[1:2, :]
        b2 = bl_ref[2:3, :]

        # Hoisted layer-0 input projection: all timesteps in one matmul.
        gx0 = jnp.dot(x_ref[...], wih0, preferred_element_type=f32) + b0

        zeros = jnp.zeros((Bp, H), f32)
        h0, c0 = zeros, zeros
        h1, c1 = zeros, zeros
        h2, c2 = zeros, zeros

        # Wavefront: macro-step s => layer0@t=s, layer1@t=s-1, layer2@t=s-2.
        # All three reads use the pre-step states; commits happen at the end
        # of the macro-step, so the three cell updates are independent (ILP).
        for s in range(T + 2):           # fully unrolled, T static
            nh0 = nc0 = nh1 = nc1 = nh2 = nc2 = None
            if s < T:
                g = gx0[s * Bp:(s + 1) * Bp, :] + jnp.dot(
                    h0.astype(bf16), whh0, preferred_element_type=f32)
                nh0, nc0 = lstm_cell(g, c0)
            if 1 <= s <= T:
                xin = jnp.concatenate([h0, h1], axis=1).astype(bf16)  # (Bp,2H)
                g = jnp.dot(xin, wslab1, preferred_element_type=f32) + b1
                nh1, nc1 = lstm_cell(g, c1)
            if 2 <= s <= T + 1:
                xin = jnp.concatenate([h1, h2], axis=1).astype(bf16)
                g = jnp.dot(xin, wslab2, preferred_element_type=f32) + b2
                nh2, nc2 = lstm_cell(g, c2)
            if nh0 is not None:
                h0, c0 = nh0, nc0
            if nh1 is not None:
                h1, c1 = nh1, nc1
            if nh2 is not None:
                h2, c2 = nh2, nc2
        # h2 now holds the last-timestep output of the top LSTM layer.

        # ---- head: (BN folded into fc1) -> ReLU -> fc2 -> softmax ----
        w1h = wh_ref[0:H, :]                         # (H, F1)   bf16
        w2h = wh_ref[H:H + F1, :]                    # (F1, F1)  bf16 (padded)
        bh1 = bh_ref[0:1, :]                         # (1, F1)   f32
        bh2 = bh_ref[1:2, :]                         # (1, F1)   f32 (-1e9 pad)

        a1 = jnp.dot(h2.astype(bf16), w1h, preferred_element_type=f32) + bh1
        a1 = jnp.maximum(a1, 0.0)
        logits = jnp.dot(a1.astype(bf16), w2h, preferred_element_type=f32) + bh2
        m = jnp.max(logits, axis=1, keepdims=True)
        e = jnp.exp(logits - m)
        denom = jnp.sum(e, axis=1, keepdims=True)
        out_ref[...] = e * pl.reciprocal(denom, approx=True)

    return kernel


# ----------------------------------------------------------------------------
# Full forward pass (single pallas_call).
# ----------------------------------------------------------------------------
def music_lstm_forward(x_btd, params):
    # x_btd: (B, T, D) batch_first, matching PyTorch.
    B, T, D = x_btd.shape
    H = params["lstm"][0]["w_hh_t"].shape[0]
    F1 = params["w1_t"].shape[1]                 # 256
    OUT = params["w2_t"].shape[1]
    Bp = max(8, ((B + 7) // 8) * 8)              # pad batch to a sublane group

    # Time-major, batch-padded, bf16 input: row index = t*Bp + b.
    x_tbd = jnp.transpose(x_btd, (1, 0, 2))                      # (T, B, D)
    x_tbd = jnp.pad(x_tbd, ((0, 0), (0, Bp - B), (0, 0)))        # (T, Bp, D)
    x_flat = x_tbd.reshape(T * Bp, D).astype(jnp.bfloat16)

    # Fold eval-mode BatchNorm1d into fc1 (host-side, free, done in f32).
    bn = params["bn"]
    scale = bn["gamma"] / jnp.sqrt(bn["running_var"] + 1e-5)     # (H,)
    shift = bn["beta"] - bn["running_mean"] * scale              # (H,)
    w1_folded = scale[:, None] * params["w1_t"]                  # (H, F1)
    b1_folded = params["b1"] + shift[None, :] @ params["w1_t"]   # (1, F1)

    # Packed LSTM weight slab (bf16): [W_ih0; W_hh0; W_ih1; W_hh1; W_ih2; W_hh2]
    l0, l1, l2 = params["lstm"]
    w_lstm = jnp.concatenate(
        [l0["w_ih_t"], l0["w_hh_t"],
         l1["w_ih_t"], l1["w_hh_t"],
         l2["w_ih_t"], l2["w_hh_t"]], axis=0).astype(jnp.bfloat16)  # (D+5H, 4H)
    b_lstm = jnp.concatenate([l0["b"], l1["b"], l2["b"]], axis=0)   # (3, 4H) f32

    # Packed head slab (bf16): fc1 (BN-folded) stacked over fc2 padded to F1
    # output lanes (zero weight columns, -1e9 bias so softmax gives exactly 0).
    w2_pad = jnp.zeros((F1, F1), jnp.float32).at[:, :OUT].set(params["w2_t"])
    b2_pad = jnp.full((1, F1), -1e9, jnp.float32).at[:, :OUT].set(params["b2"])
    w_head = jnp.concatenate([w1_folded, w2_pad], axis=0).astype(jnp.bfloat16)
    b_head = jnp.concatenate([b1_folded, b2_pad], axis=0)           # (2, F1) f32

    vspec = pl.BlockSpec(memory_space=pltpu.MemorySpace.VMEM)
    kernel = _make_fused_kernel(T, Bp, D, H, F1)

    out_pad = pl.pallas_call(
        kernel,
        out_shape=jax.ShapeDtypeStruct((Bp, F1), jnp.float32),
        in_specs=[vspec] * 5,
        out_specs=vspec,
    )(x_flat, w_lstm, b_lstm, w_head, b_head)

    # Drop padded batch rows and padded logit columns.
    return out_pad[:B, :OUT]


# ----------------------------------------------------------------------------
# Parameter init (PyTorch-style layouts, pre-transposed for lane-major matmul).
# ----------------------------------------------------------------------------
def init_params(key, input_size, hidden_size, output_size, num_layers=3):
    params = {"lstm": []}
    k = 1.0 / jnp.sqrt(hidden_size)
    keys = jax.random.split(key, num_layers * 4 + 8)
    ki = iter(range(len(keys)))
    for layer in range(num_layers):
        d_in = input_size if layer == 0 else hidden_size
        w_ih = jax.random.uniform(keys[next(ki)], (4 * hidden_size, d_in),
                                  minval=-k, maxval=k, dtype=jnp.float32)
        w_hh = jax.random.uniform(keys[next(ki)], (4 * hidden_size, hidden_size),
                                  minval=-k, maxval=k, dtype=jnp.float32)
        b_ih = jax.random.uniform(keys[next(ki)], (4 * hidden_size,),
                                  minval=-k, maxval=k, dtype=jnp.float32)
        b_hh = jax.random.uniform(keys[next(ki)], (4 * hidden_size,),
                                  minval=-k, maxval=k, dtype=jnp.float32)
        params["lstm"].append({
            "w_ih_t": w_ih.T,                       # (d_in, 4H)
            "w_hh_t": w_hh.T,                       # (H, 4H)
            "b": (b_ih + b_hh).reshape(1, -1),      # (1, 4H)
        })
    params["bn"] = {
        "gamma": jnp.ones((hidden_size,), jnp.float32),
        "beta": jnp.zeros((hidden_size,), jnp.float32),
        "running_mean": jnp.zeros((hidden_size,), jnp.float32),
        "running_var": jnp.ones((hidden_size,), jnp.float32),
    }
    k1 = 1.0 / jnp.sqrt(hidden_size)
    w1 = jax.random.uniform(keys[next(ki)], (256, hidden_size),
                            minval=-k1, maxval=k1, dtype=jnp.float32)
    b1 = jax.random.uniform(keys[next(ki)], (256,),
                            minval=-k1, maxval=k1, dtype=jnp.float32)
    k2 = 1.0 / jnp.sqrt(256.0)
    w2 = jax.random.uniform(keys[next(ki)], (output_size, 256),
                            minval=-k2, maxval=k2, dtype=jnp.float32)
    b2 = jax.random.uniform(keys[next(ki)], (output_size,),
                            minval=-k2, maxval=k2, dtype=jnp.float32)
    params["w1_t"] = w1.T                  # (H, 256)
    params["b1"] = b1.reshape(1, -1)       # (1, 256)
    params["w2_t"] = w2.T                  # (256, out)
    params["b2"] = b2.reshape(1, -1)       # (1, out)
    return params


if __name__ == "__main__":
    B, T = 2, 8
    input_size, hidden_size, output_size = 16, 32, 12

    key = jax.random.PRNGKey(0)
    kx, kp = jax.random.split(key)
    x = jax.random.normal(kx, (B, T, input_size), dtype=jnp.float32)
    params = init_params(kp, input_size, hidden_size, output_size)

    out = music_lstm_forward(x, params)
    out = jax.block_until_ready(out)

    assert out.shape == (B, output_size)
    assert bool(jnp.all(jnp.isfinite(out)))
    assert bool(jnp.all(out >= 0.0))
    # softmax rows sum to ~1 (approx-reciprocal tolerance)
    assert bool(jnp.allclose(jnp.sum(out, axis=1), 1.0, atol=1e-2))
    print("KERNEL_OK")
</pallas_src>

<mosaic_0001>
module attributes {stable_mosaic.version = 11 : i64} {
  func.func @kernel(%arg0: memref<64x16xbf16, #tpu.memory_space<vmem>>, %arg1: memref<176x128xbf16, #tpu.memory_space<vmem>>, %arg2: memref<3x128xf32, #tpu.memory_space<vmem>>, %arg3: memref<288x256xbf16, #tpu.memory_space<vmem>>, %arg4: memref<2x256xf32, #tpu.memory_space<vmem>>, %arg5: memref<8x256xf32, #tpu.memory_space<vmem>>) attributes {dimension_semantics = [], scalar_prefetch = 0 : i64, scratch_operands = 0 : i64, tpu.core_type = #tpu.core_type<tc>} {
    %c0 = arith.constant 0 : index
    %c0_0 = arith.constant 0 : index
    %0 = vector.load %arg1[%c0, %c0_0] : memref<176x128xbf16, #tpu.memory_space<vmem>>, vector<16x128xbf16>
    %c16 = arith.constant 16 : index
    %c0_1 = arith.constant 0 : index
    %1 = vector.load %arg1[%c16, %c0_1] : memref<176x128xbf16, #tpu.memory_space<vmem>>, vector<32x128xbf16>
    %c48 = arith.constant 48 : index
    %c0_2 = arith.constant 0 : index
    %2 = vector.load %arg1[%c48, %c0_2] : memref<176x128xbf16, #tpu.memory_space<vmem>>, vector<64x128xbf16>
    %c112 = arith.constant 112 : index
    %c0_3 = arith.constant 0 : index
    %3 = vector.load %arg1[%c112, %c0_3] : memref<176x128xbf16, #tpu.memory_space<vmem>>, vector<64x128xbf16>
    %c0_4 = arith.constant 0 : index
    %c0_5 = arith.constant 0 : index
    %4 = vector.load %arg2[%c0_4, %c0_5] : memref<3x128xf32, #tpu.memory_space<vmem>>, vector<1x128xf32>
    %c1 = arith.constant 1 : index
    %c0_6 = arith.constant 0 : index
    %5 = vector.load %arg2[%c1, %c0_6] : memref<3x128xf32, #tpu.memory_space<vmem>>, vector<1x128xf32>
    %c2 = arith.constant 2 : index
    %c0_7 = arith.constant 0 : index
    %6 = vector.load %arg2[%c2, %c0_7] : memref<3x128xf32, #tpu.memory_space<vmem>>, vector<1x128xf32>
    %c0_8 = arith.constant 0 : index
    %c0_9 = arith.constant 0 : index
    %7 = vector.load %arg0[%c0_8, %c0_9] : memref<64x16xbf16, #tpu.memory_space<vmem>>, vector<64x16xbf16>
    %cst = arith.constant dense<0.000000e+00> : vector<64x128xf32>
    %8 = tpu.matmul %7, %0, %cst {dimension_numbers = #tpu.dot_dimension_numbers<[1], [0], [0], [1], [0, 0, 1, 1], [], []>} : vector<64x16xbf16>, vector<16x128xbf16>, vector<64x128xf32> -> vector<64x128xf32>
    %9 = vector.broadcast %4 : vector<1x128xf32> to vector<64x128xf32>
    %10 = arith.addf %8, %9 : vector<64x128xf32>
    %cst_10 = arith.constant 0.000000e+00 : f32
    %11 = vector.broadcast %cst_10 : f32 to vector<8x32xf32>
    %12 = vector.extract_strided_slice %10 {offsets = [0, 0], sizes = [8, 128], strides = [1, 1]} : vector<64x128xf32> to vector<8x128xf32>
    %13 = arith.truncf %11 : vector<8x32xf32> to vector<8x32xbf16>
    %cst_11 = arith.constant dense<0.000000e+00> : vector<8x128xf32>
    %14 = tpu.matmul %13, %1, %cst_11 {dimension_numbers = #tpu.dot_dimension_numbers<[1], [0], [0], [1], [0, 0, 1, 1], [], []>} : vector<8x32xbf16>, vector<32x128xbf16>, vector<8x128xf32> -> vector<8x128xf32>
    %15 = arith.addf %12, %14 : vector<8x128xf32>
    %16 = arith.negf %15 : vector<8x128xf32>
    %17 = math.exp %16 : vector<8x128xf32>
    %cst_12 = arith.constant 1.000000e+00 : f32
    %18 = vector.broadcast %cst_12 : f32 to vector<8x128xf32>
    %19 = arith.addf %18, %17 : vector<8x128xf32>
    %20 = arith.divf %18, %19 : vector<8x128xf32>
    %21 = math.tanh %15 : vector<8x128xf32>
    %22 = vector.extract_strided_slice %20 {offsets = [0, 0], sizes = [8, 32], strides = [1, 1]} : vector<8x128xf32> to vector<8x32xf32>
    %23 = vector.extract_strided_slice %20 {offsets = [0, 32], sizes = [8, 32], strides = [1, 1]} : vector<8x128xf32> to vector<8x32xf32>
    %24 = vector.extract_strided_slice %21 {offsets = [0, 64], sizes = [8, 32], strides = [1, 1]} : vector<8x128xf32> to vector<8x32xf32>
    %25 = vector.extract_strided_slice %20 {offsets = [0, 96], sizes = [8, 32], strides = [1, 1]} : vector<8x128xf32> to vector<8x32xf32>
    %26 = arith.mulf %23, %11 : vector<8x32xf32>
    %27 = arith.mulf %22, %24 : vector<8x32xf32>
    %28 = arith.addf %26, %27 : vector<8x32xf32>
    %29 = math.tanh %28 : vector<8x32xf32>
    %30 = arith.mulf %25, %29 : vector<8x32xf32>
    %31 = vector.extract_strided_slice %10 {offsets = [8, 0], sizes = [8, 128], strides = [1, 1]} : vector<64x128xf32> to vector<8x128xf32>
    %32 = arith.truncf %30 : vector<8x32xf32> to vector<8x32xbf16>
    %cst_13 = arith.constant dense<0.000000e+00> : vector<8x128xf32>
    %33 = tpu.matmul %32, %1, %cst_13 {dimension_numbers = #tpu.dot_dimension_numbers<[1], [0], [0], [1], [0, 0, 1, 1], [], []>} : vector<8x32xbf16>, vector<32x128xbf16>, vector<8x128xf32> -> vector<8x128xf32>
    %34 = arith.addf %31, %33 : vector<8x128xf32>
    %35 = arith.negf %34 : vector<8x128xf32>
    %36 = math.exp %35 : vector<8x128xf32>
    %cst_14 = arith.constant 1.000000e+00 : f32
    %37 = vector.broadcast %cst_14 : f32 to vector<8x128xf32>
    %38 = arith.addf %37, %36 : vector<8x128xf32>
    %39 = arith.divf %37, %38 : vector<8x128xf32>
    %40 = math.tanh %34 : vector<8x128xf32>
    %41 = vector.extract_strided_slice %39 {offsets = [0, 0], sizes = [8, 32], strides = [1, 1]} : vector<8x128xf32> to vector<8x32xf32>
    %42 = vector.extract_strided_slice %39 {offsets = [0, 32], sizes = [8, 32], strides = [1, 1]} : vector<8x128xf32> to vector<8x32xf32>
    %43 = vector.extract_strided_slice %40 {offsets = [0, 64], sizes = [8, 32], strides = [1, 1]} : vector<8x128xf32> to vector<8x32xf32>
    %44 = vector.extract_strided_slice %39 {offsets = [0, 96], sizes = [8, 32], strides = [1, 1]} : vector<8x128xf32> to vector<8x32xf32>
    %45 = arith.mulf %42, %28 : vector<8x32xf32>
    %46 = arith.mulf %41, %43 : vector<8x32xf32>
    %47 = arith.addf %45, %46 : vector<8x32xf32>
    %48 = math.tanh %47 : vector<8x32xf32>
    %49 = arith.mulf %44, %48 : vector<8x32xf32>
    %50 = tpu.concatenate %30, %11 in 1 : vector<8x32xf32>, vector<8x32xf32> -> vector<8x64xf32>
    %51 = arith.truncf %50 : vector<8x64xf32> to vector<8x64xbf16>
    %cst_15 = arith.constant dense<0.000000e+00> : vector<8x128xf32>
    %52 = tpu.matmul %51, %2, %cst_15 {dimension_numbers = #tpu.dot_dimension_numbers<[1], [0], [0], [1], [0, 0, 1, 1], [], []>} : vector<8x64xbf16>, vector<64x128xbf16>, vector<8x128xf32> -> vector<8x128xf32>
    %53 = vector.broadcast %5 : vector<1x128xf32> to vector<8x128xf32>
    %54 = arith.addf %52, %53 : vector<8x128xf32>
    %55 = arith.negf %54 : vector<8x128xf32>
    %56 = math.exp %55 : vector<8x128xf32>
    %cst_16 = arith.constant 1.000000e+00 : f32
    %57 = vector.broadcast %cst_16 : f32 to vector<8x128xf32>
    %58 = arith.addf %57, %56 : vector<8x128xf32>
    %59 = arith.divf %57, %58 : vector<8x128xf32>
    %60 = math.tanh %54 : vector<8x128xf32>
    %61 = vector.extract_strided_slice %59 {offsets = [0, 0], sizes = [8, 32], strides = [1, 1]} : vector<8x128xf32> to vector<8x32xf32>
    %62 = vector.extract_strided_slice %59 {offsets = [0, 32], sizes = [8, 32], strides = [1, 1]} : vector<8x128xf32> to vector<8x32xf32>
    %63 = vector.extract_strided_slice %60 {offsets = [0, 64], sizes = [8, 32], strides = [1, 1]} : vector<8x128xf32> to vector<8x32xf32>
    %64 = vector.extract_strided_slice %59 {offsets = [0, 96], sizes = [8, 32], strides = [1, 1]} : vector<8x128xf32> to vector<8x32xf32>
    %65 = arith.mulf %62, %11 : vector<8x32xf32>
    %66 = arith.mulf %61, %63 : vector<8x32xf32>
    %67 = arith.addf %65, %66 : vector<8x32xf32>
    %68 = math.tanh %67 : vector<8x32xf32>
    %69 = arith.mulf %64, %68 : vector<8x32xf32>
    %70 = vector.extract_strided_slice %10 {offsets = [16, 0], sizes = [8, 128], strides = [1, 1]} : vector<64x128xf32> to vector<8x128xf32>
    %71 = arith.truncf %49 : vector<8x32xf32> to vector<8x32xbf16>
    %cst_17 = arith.constant dense<0.000000e+00> : vector<8x128xf32>
    %72 = tpu.matmul %71, %1, %cst_17 {dimension_numbers = #tpu.dot_dimension_numbers<[1], [0], [0], [1], [0, 0, 1, 1], [], []>} : vector<8x32xbf16>, vector<32x128xbf16>, vector<8x128xf32> -> vector<8x128xf32>
    %73 = arith.addf %70, %72 : vector<8x128xf32>
    %74 = arith.negf %73 : vector<8x128xf32>
    %75 = math.exp %74 : vector<8x128xf32>
    %cst_18 = arith.constant 1.000000e+00 : f32
    %76 = vector.broadcast %cst_18 : f32 to vector<8x128xf32>
    %77 = arith.addf %76, %75 : vector<8x128xf32>
    %78 = arith.divf %76, %77 : vector<8x128xf32>
    %79 = math.tanh %73 : vector<8x128xf32>
    %80 = vector.extract_strided_slice %78 {offsets = [0, 0], sizes = [8, 32], strides = [1, 1]} : vector<8x128xf32> to vector<8x32xf32>
    %81 = vector.extract_strided_slice %78 {offsets = [0, 32], sizes = [8, 32], strides = [1, 1]} : vector<8x128xf32> to vector<8x32xf32>
    %82 = vector.extract_strided_slice %79 {offsets = [0, 64], sizes = [8, 32], strides = [1, 1]} : vector<8x128xf32> to vector<8x32xf32>
    %83 = vector.extract_strided_slice %78 {offsets = [0, 96], sizes = [8, 32], strides = [1, 1]} : vector<8x128xf32> to vector<8x32xf32>
    %84 = arith.mulf %81, %47 : vector<8x32xf32>
    %85 = arith.mulf %80, %82 : vector<8x32xf32>
    %86 = arith.addf %84, %85 : vector<8x32xf32>
    %87 = math.tanh %86 : vector<8x32xf32>
    %88 = arith.mulf %83, %87 : vector<8x32xf32>
    %89 = tpu.concatenate %49, %69 in 1 : vector<8x32xf32>, vector<8x32xf32> -> vector<8x64xf32>
    %90 = arith.truncf %89 : vector<8x64xf32> to vector<8x64xbf16>
    %cst_19 = arith.constant dense<0.000000e+00> : vector<8x128xf32>
    %91 = tpu.matmul %90, %2, %cst_19 {dimension_numbers = #tpu.dot_dimension_numbers<[1], [0], [0], [1], [0, 0, 1, 1], [], []>} : vector<8x64xbf16>, vector<64x128xbf16>, vector<8x128xf32> -> vector<8x128xf32>
    %92 = vector.broadcast %5 : vector<1x128xf32> to vector<8x128xf32>
    %93 = arith.addf %91, %92 : vector<8x128xf32>
    %94 = arith.negf %93 : vector<8x128xf32>
    %95 = math.exp %94 : vector<8x128xf32>
    %cst_20 = arith.constant 1.000000e+00 : f32
    %96 = vector.broadcast %cst_20 : f32 to vector<8x128xf32>
    %97 = arith.addf %96, %95 : vector<8x128xf32>
    %98 = arith.divf %96, %97 : vector<8x128xf32>
    %99 = math.tanh %93 : vector<8x128xf32>
    %100 = vector.extract_strided_slice %98 {offsets = [0, 0], sizes = [8, 32], strides = [1, 1]} : vector<8x128xf32> to vector<8x32xf32>
    %101 = vector.extract_strided_slice %98 {offsets = [0, 32], sizes = [8, 32], strides = [1, 1]} : vector<8x128xf32> to vector<8x32xf32>
    %102 = vector.extract_strided_slice %99 {offsets = [0, 64], sizes = [8, 32], strides = [1, 1]} : vector<8x128xf32> to vector<8x32xf32>
    %103 = vector.extract_strided_slice %98 {offsets = [0, 96], sizes = [8, 32], strides = [1, 1]} : vector<8x128xf32> to vector<8x32xf32>
    %104 = arith.mulf %101, %67 : vector<8x32xf32>
    %105 = arith.mulf %100, %102 : vector<8x32xf32>
    %106 = arith.addf %104, %105 : vector<8x32xf32>
    %107 = math.tanh %106 : vector<8x32xf32>
    %108 = arith.mulf %103, %107 : vector<8x32xf32>
    %109 = tpu.concatenate %69, %11 in 1 : vector<8x32xf32>, vector<8x32xf32> -> vector<8x64xf32>
    %110 = arith.truncf %109 : vector<8x64xf32> to vector<8x64xbf16>
    %cst_21 = arith.constant dense<0.000000e+00> : vector<8x128xf32>
    %111 = tpu.matmul %110, %3, %cst_21 {dimension_numbers = #tpu.dot_dimension_numbers<[1], [0], [0], [1], [0, 0, 1, 1], [], []>} : vector<8x64xbf16>, vector<64x128xbf16>, vector<8x128xf32> -> vector<8x128xf32>
    %112 = vector.broadcast %6 : vector<1x128xf32> to vector<8x128xf32>
    %113 = arith.addf %111, %112 : vector<8x128xf32>
    %114 = arith.negf %113 : vector<8x128xf32>
    %115 = math.exp %114 : vector<8x128xf32>
    %cst_22 = arith.constant 1.000000e+00 : f32
    %116 = vector.broadcast %cst_22 : f32 to vector<8x128xf32>
    %117 = arith.addf %116, %115 : vector<8x128xf32>
    %118 = arith.divf %116, %117 : vector<8x128xf32>
    %119 = math.tanh %113 : vector<8x128xf32>
    %120 = vector.extract_strided_slice %118 {offsets = [0, 0], sizes = [8, 32], strides = [1, 1]} : vector<8x128xf32> to vector<8x32xf32>
    %121 = vector.extract_strided_slice %118 {offsets = [0, 32], sizes = [8, 32], strides = [1, 1]} : vector<8x128xf32> to vector<8x32xf32>
    %122 = vector.extract_strided_slice %119 {offsets = [0, 64], sizes = [8, 32], strides = [1, 1]} : vector<8x128xf32> to vector<8x32xf32>
    %123 = vector.extract_strided_slice %118 {offsets = [0, 96], sizes = [8, 32], strides = [1, 1]} : vector<8x128xf32> to vector<8x32xf32>
    %124 = arith.mulf %121, %11 : vector<8x32xf32>
    %125 = arith.mulf %120, %122 : vector<8x32xf32>
    %126 = arith.addf %124, %125 : vector<8x32xf32>
    %127 = math.tanh %126 : vector<8x32xf32>
    %128 = arith.mulf %123, %127 : vector<8x32xf32>
    %129 = vector.extract_strided_slice %10 {offsets = [24, 0], sizes = [8, 128], strides = [1, 1]} : vector<64x128xf32> to vector<8x128xf32>
    %130 = arith.truncf %88 : vector<8x32xf32> to vector<8x32xbf16>
    %cst_23 = arith.constant dense<0.000000e+00> : vector<8x128xf32>
    %131 = tpu.matmul %130, %1, %cst_23 {dimension_numbers = #tpu.dot_dimension_numbers<[1], [0], [0], [1], [0, 0, 1, 1], [], []>} : vector<8x32xbf16>, vector<32x128xbf16>, vector<8x128xf32> -> vector<8x128xf32>
    %132 = arith.addf %129, %131 : vector<8x128xf32>
    %133 = arith.negf %132 : vector<8x128xf32>
    %134 = math.exp %133 : vector<8x128xf32>
    %cst_24 = arith.constant 1.000000e+00 : f32
    %135 = vector.broadcast %cst_24 : f32 to vector<8x128xf32>
    %136 = arith.addf %135, %134 : vector<8x128xf32>
    %137 = arith.divf %135, %136 : vector<8x128xf32>
    %138 = math.tanh %132 : vector<8x128xf32>
    %139 = vector.extract_strided_slice %137 {offsets = [0, 0], sizes = [8, 32], strides = [1, 1]} : vector<8x128xf32> to vector<8x32xf32>
    %140 = vector.extract_strided_slice %137 {offsets = [0, 32], sizes = [8, 32], strides = [1, 1]} : vector<8x128xf32> to vector<8x32xf32>
    %141 = vector.extract_strided_slice %138 {offsets = [0, 64], sizes = [8, 32], strides = [1, 1]} : vector<8x128xf32> to vector<8x32xf32>
    %142 = vector.extract_strided_slice %137 {offsets = [0, 96], sizes = [8, 32], strides = [1, 1]} : vector<8x128xf32> to vector<8x32xf32>
    %143 = arith.mulf %140, %86 : vector<8x32xf32>
    %144 = arith.mulf %139, %141 : vector<8x32xf32>
    %145 = arith.addf %143, %144 : vector<8x32xf32>
    %146 = math.tanh %145 : vector<8x32xf32>
    %147 = arith.mulf %142, %146 : vector<8x32xf32>
    %148 = tpu.concatenate %88, %108 in 1 : vector<8x32xf32>, vector<8x32xf32> -> vector<8x64xf32>
    %149 = arith.truncf %148 : vector<8x64xf32> to vector<8x64xbf16>
    %cst_25 = arith.constant dense<0.000000e+00> : vector<8x128xf32>
    %150 = tpu.matmul %149, %2, %cst_25 {dimension_numbers = #tpu.dot_dimension_numbers<[1], [0], [0], [1], [0, 0, 1, 1], [], []>} : vector<8x64xbf16>, vector<64x128xbf16>, vector<8x128xf32> -> vector<8x128xf32>
    %151 = vector.broadcast %5 : vector<1x128xf32> to vector<8x128xf32>
    %152 = arith.addf %150, %151 : vector<8x128xf32>
    %153 = arith.negf %152 : vector<8x128xf32>
    %154 = math.exp %153 : vector<8x128xf32>
    %cst_26 = arith.constant 1.000000e+00 : f32
    %155 = vector.broadcast %cst_26 : f32 to vector<8x128xf32>
    %156 = arith.addf %155, %154 : vector<8x128xf32>
    %157 = arith.divf %155, %156 : vector<8x128xf32>
    %158 = math.tanh %152 : vector<8x128xf32>
    %159 = vector.extract_strided_slice %157 {offsets = [0, 0], sizes = [8, 32], strides = [1, 1]} : vector<8x128xf32> to vector<8x32xf32>
    %160 = vector.extract_strided_slice %157 {offsets = [0, 32], sizes = [8, 32], strides = [1, 1]} : vector<8x128xf32> to vector<8x32xf32>
    %161 = vector.extract_strided_slice %158 {offsets = [0, 64], sizes = [8, 32], strides = [1, 1]} : vector<8x128xf32> to vector<8x32xf32>
    %162 = vector.extract_strided_slice %157 {offsets = [0, 96], sizes = [8, 32], strides = [1, 1]} : vector<8x128xf32> to vector<8x32xf32>
    %163 = arith.mulf %160, %106 : vector<8x32xf32>
    %164 = arith.mulf %159, %161 : vector<8x32xf32>
    %165 = arith.addf %163, %164 : vector<8x32xf32>
    %166 = math.tanh %165 : vector<8x32xf32>
    %167 = arith.mulf %162, %166 : vector<8x32xf32>
    %168 = tpu.concatenate %108, %128 in 1 : vector<8x32xf32>, vector<8x32xf32> -> vector<8x64xf32>
    %169 = arith.truncf %168 : vector<8x64xf32> to vector<8x64xbf16>
    %cst_27 = arith.constant dense<0.000000e+00> : vector<8x128xf32>
    %170 = tpu.matmul %169, %3, %cst_27 {dimension_numbers = #tpu.dot_dimension_numbers<[1], [0], [0], [1], [0, 0, 1, 1], [], []>} : vector<8x64xbf16>, vector<64x128xbf16>, vector<8x128xf32> -> vector<8x128xf32>
    %171 = vector.broadcast %6 : vector<1x128xf32> to vector<8x128xf32>
    %172 = arith.addf %170, %171 : vector<8x128xf32>
    %173 = arith.negf %172 : vector<8x128xf32>
    %174 = math.exp %173 : vector<8x128xf32>
    %cst_28 = arith.constant 1.000000e+00 : f32
    %175 = vector.broadcast %cst_28 : f32 to vector<8x128xf32>
    %176 = arith.addf %175, %174 : vector<8x128xf32>
    %177 = arith.divf %175, %176 : vector<8x128xf32>
    %178 = math.tanh %172 : vector<8x128xf32>
    %179 = vector.extract_strided_slice %177 {offsets = [0, 0], sizes = [8, 32], strides = [1, 1]} : vector<8x128xf32> to vector<8x32xf32>
    %180 = vector.extract_strided_slice %177 {offsets = [0, 32], sizes = [8, 32], strides = [1, 1]} : vector<8x128xf32> to vector<8x32xf32>
    %181 = vector.extract_strided_slice %178 {offsets = [0, 64], sizes = [8, 32], strides = [1, 1]} : vector<8x128xf32> to vector<8x32xf32>
    %182 = vector.extract_strided_slice %177 {offsets = [0, 96], sizes = [8, 32], strides = [1, 1]} : vector<8x128xf32> to vector<8x32xf32>
    %183 = arith.mulf %180, %126 : vector<8x32xf32>
    %184 = arith.mulf %179, %181 : vector<8x32xf32>
    %185 = arith.addf %183, %184 : vector<8x32xf32>
    %186 = math.tanh %185 : vector<8x32xf32>
    %187 = arith.mulf %182, %186 : vector<8x32xf32>
    %188 = vector.extract_strided_slice %10 {offsets = [32, 0], sizes = [8, 128], strides = [1, 1]} : vector<64x128xf32> to vector<8x128xf32>
    %189 = arith.truncf %147 : vector<8x32xf32> to vector<8x32xbf16>
    %cst_29 = arith.constant dense<0.000000e+00> : vector<8x128xf32>
    %190 = tpu.matmul %189, %1, %cst_29 {dimension_numbers = #tpu.dot_dimension_numbers<[1], [0], [0], [1], [0, 0, 1, 1], [], []>} : vector<8x32xbf16>, vector<32x128xbf16>, vector<8x128xf32> -> vector<8x128xf32>
    %191 = arith.addf %188, %190 : vector<8x128xf32>
    %192 = arith.negf %191 : vector<8x128xf32>
    %193 = math.exp %192 : vector<8x128xf32>
    %cst_30 = arith.constant 1.000000e+00 : f32
    %194 = vector.broadcast %cst_30 : f32 to vector<8x128xf32>
    %195 = arith.addf %194, %193 : vector<8x128xf32>
    %196 = arith.divf %194, %195 : vector<8x128xf32>
    %197 = math.tanh %191 : vector<8x128xf32>
    %198 = vector.extract_strided_slice %196 {offsets = [0, 0], sizes = [8, 32], strides = [1, 1]} : vector<8x128xf32> to vector<8x32xf32>
    %199 = vector.extract_strided_slice %196 {offsets = [0, 32], sizes = [8, 32], strides = [1, 1]} : vector<8x128xf32> to vector<8x32xf32>
    %200 = vector.extract_strided_slice %197 {offsets = [0, 64], sizes = [8, 32], strides = [1, 1]} : vector<8x128xf32> to vector<8x32xf32>
    %201 = vector.extract_strided_slice %196 {offsets = [0, 96], sizes = [8, 32], strides = [1, 1]} : vector<8x128xf32> to vector<8x32xf32>
    %202 = arith.mulf %199, %145 : vector<8x32xf32>
    %203 = arith.mulf %198, %200 : vector<8x32xf32>
    %204 = arith.addf %202, %203 : vector<8x32xf32>
    %205 = math.tanh %204 : vector<8x32xf32>
    %206 = arith.mulf %201, %205 : vector<8x32xf32>
    %207 = tpu.concatenate %147, %167 in 1 : vector<8x32xf32>, vector<8x32xf32> -> vector<8x64xf32>
    %208 = arith.truncf %207 : vector<8x64xf32> to vector<8x64xbf16>
    %cst_31 = arith.constant dense<0.000000e+00> : vector<8x128xf32>
    %209 = tpu.matmul %208, %2, %cst_31 {dimension_numbers = #tpu.dot_dimension_numbers<[1], [0], [0], [1], [0, 0, 1, 1], [], []>} : vector<8x64xbf16>, vector<64x128xbf16>, vector<8x128xf32> -> vector<8x128xf32>
    %210 = vector.broadcast %5 : vector<1x128xf32> to vector<8x128xf32>
    %211 = arith.addf %209, %210 : vector<8x128xf32>
    %212 = arith.negf %211 : vector<8x128xf32>
    %213 = math.exp %212 : vector<8x128xf32>
    %cst_32 = arith.constant 1.000000e+00 : f32
    %214 = vector.broadcast %cst_32 : f32 to vector<8x128xf32>
    %215 = arith.addf %214, %213 : vector<8x128xf32>
    %216 = arith.divf %214, %215 : vector<8x128xf32>
    %217 = math.tanh %211 : vector<8x128xf32>
    %218 = vector.extract_strided_slice %216 {offsets = [0, 0], sizes = [8, 32], strides = [1, 1]} : vector<8x128xf32> to vector<8x32xf32>
    %219 = vector.extract_strided_slice %216 {offsets = [0, 32], sizes = [8, 32], strides = [1, 1]} : vector<8x128xf32> to vector<8x32xf32>
    %220 = vector.extract_strided_slice %217 {offsets = [0, 64], sizes = [8, 32], strides = [1, 1]} : vector<8x128xf32> to vector<8x32xf32>
    %221 = vector.extract_strided_slice %216 {offsets = [0, 96], sizes = [8, 32], strides = [1, 1]} : vector<8x128xf32> to vector<8x32xf32>
    %222 = arith.mulf %219, %165 : vector<8x32xf32>
    %223 = arith.mulf %218, %220 : vector<8x32xf32>
    %224 = arith.addf %222, %223 : vector<8x32xf32>
    %225 = math.tanh %224 : vector<8x32xf32>
    %226 = arith.mulf %221, %225 : vector<8x32xf32>
    %227 = tpu.concatenate %167, %187 in 1 : vector<8x32xf32>, vector<8x32xf32> -> vector<8x64xf32>
    %228 = arith.truncf %227 : vector<8x64xf32> to vector<8x64xbf16>
    %cst_33 = arith.constant dense<0.000000e+00> : vector<8x128xf32>
    %229 = tpu.matmul %228, %3, %cst_33 {dimension_numbers = #tpu.dot_dimension_numbers<[1], [0], [0], [1], [0, 0, 1, 1], [], []>} : vector<8x64xbf16>, vector<64x128xbf16>, vector<8x128xf32> -> vector<8x128xf32>
    %230 = vector.broadcast %6 : vector<1x128xf32> to vector<8x128xf32>
    %231 = arith.addf %229, %230 : vector<8x128xf32>
    %232 = arith.negf %231 : vector<8x128xf32>
    %233 = math.exp %232 : vector<8x128xf32>
    %cst_34 = arith.constant 1.000000e+00 : f32
    %234 = vector.broadcast %cst_34 : f32 to vector<8x128xf32>
    %235 = arith.addf %234, %233 : vector<8x128xf32>
    %236 = arith.divf %234, %235 : vector<8x128xf32>
    %237 = math.tanh %231 : vector<8x128xf32>
    %238 = vector.extract_strided_slice %236 {offsets = [0, 0], sizes = [8, 32], strides = [1, 1]} : vector<8x128xf32> to vector<8x32xf32>
    %239 = vector.extract_strided_slice %236 {offsets = [0, 32], sizes = [8, 32], strides = [1, 1]} : vector<8x128xf32> to vector<8x32xf32>
    %240 = vector.extract_strided_slice %237 {offsets = [0, 64], sizes = [8, 32], strides = [1, 1]} : vector<8x128xf32> to vector<8x32xf32>
    %241 = vector.extract_strided_slice %236 {offsets = [0, 96], sizes = [8, 32], strides = [1, 1]} : vector<8x128xf32> to vector<8x32xf32>
    %242 = arith.mulf %239, %185 : vector<8x32xf32>
    %243 = arith.mulf %238, %240 : vector<8x32xf32>
    %244 = arith.addf %242, %243 : vector<8x32xf32>
    %245 = math.tanh %244 : vector<8x32xf32>
    %246 = arith.mulf %241, %245 : vector<8x32xf32>
    %247 = vector.extract_strided_slice %10 {offsets = [40, 0], sizes = [8, 128], strides = [1, 1]} : vector<64x128xf32> to vector<8x128xf32>
    %248 = arith.truncf %206 : vector<8x32xf32> to vector<8x32xbf16>
    %cst_35 = arith.constant dense<0.000000e+00> : vector<8x128xf32>
    %249 = tpu.matmul %248, %1, %cst_35 {dimension_numbers = #tpu.dot_dimension_numbers<[1], [0], [0], [1], [0, 0, 1, 1], [], []>} : vector<8x32xbf16>, vector<32x128xbf16>, vector<8x128xf32> -> vector<8x128xf32>
    %250 = arith.addf %247, %249 : vector<8x128xf32>
    %251 = arith.negf %250 : vector<8x128xf32>
    %252 = math.exp %251 : vector<8x128xf32>
    %cst_36 = arith.constant 1.000000e+00 : f32
    %253 = vector.broadcast %cst_36 : f32 to vector<8x128xf32>
    %254 = arith.addf %253, %252 : vector<8x128xf32>
    %255 = arith.divf %253, %254 : vector<8x128xf32>
    %256 = math.tanh %250 : vector<8x128xf32>
    %257 = vector.extract_strided_slice %255 {offsets = [0, 0], sizes = [8, 32], strides = [1, 1]} : vector<8x128xf32> to vector<8x32xf32>
    %258 = vector.extract_strided_slice %255 {offsets = [0, 32], sizes = [8, 32], strides = [1, 1]} : vector<8x128xf32> to vector<8x32xf32>
    %259 = vector.extract_strided_slice %256 {offsets = [0, 64], sizes = [8, 32], strides = [1, 1]} : vector<8x128xf32> to vector<8x32xf32>
    %260 = vector.extract_strided_slice %255 {offsets = [0, 96], sizes = [8, 32], strides = [1, 1]} : vector<8x128xf32> to vector<8x32xf32>
    %261 = arith.mulf %258, %204 : vector<8x32xf32>
    %262 = arith.mulf %257, %259 : vector<8x32xf32>
    %263 = arith.addf %261, %262 : vector<8x32xf32>
    %264 = math.tanh %263 : vector<8x32xf32>
    %265 = arith.mulf %260, %264 : vector<8x32xf32>
    %266 = tpu.concatenate %206, %226 in 1 : vector<8x32xf32>, vector<8x32xf32> -> vector<8x64xf32>
    %267 = arith.truncf %266 : vector<8x64xf32> to vector<8x64xbf16>
    %cst_37 = arith.constant dense<0.000000e+00> : vector<8x128xf32>
    %268 = tpu.matmul %267, %2, %cst_37 {dimension_numbers = #tpu.dot_dimension_numbers<[1], [0], [0], [1], [0, 0, 1, 1], [], []>} : vector<8x64xbf16>, vector<64x128xbf16>, vector<8x128xf32> -> vector<8x128xf32>
    %269 = vector.broadcast %5 : vector<1x128xf32> to vector<8x128xf32>
    %270 = arith.addf %268, %269 : vector<8x128xf32>
    %271 = arith.negf %270 : vector<8x128xf32>
    %272 = math.exp %271 : vector<8x128xf32>
    %cst_38 = arith.constant 1.000000e+00 : f32
    %273 = vector.broadcast %cst_38 : f32 to vector<8x128xf32>
    %274 = arith.addf %273, %272 : vector<8x128xf32>
    %275 = arith.divf %273, %274 : vector<8x128xf32>
    %276 = math.tanh %270 : vector<8x128xf32>
    %277 = vector.extract_strided_slice %275 {offsets = [0, 0], sizes = [8, 32], strides = [1, 1]} : vector<8x128xf32> to vector<8x32xf32>
    %278 = vector.extract_strided_slice %275 {offsets = [0, 32], sizes = [8, 32], strides = [1, 1]} : vector<8x128xf32> to vector<8x32xf32>
    %279 = vector.extract_strided_slice %276 {offsets = [0, 64], sizes = [8, 32], strides = [1, 1]} : vector<8x128xf32> to vector<8x32xf32>
    %280 = vector.extract_strided_slice %275 {offsets = [0, 96], sizes = [8, 32], strides = [1, 1]} : vector<8x128xf32> to vector<8x32xf32>
    %281 = arith.mulf %278, %224 : vector<8x32xf32>
    %282 = arith.mulf %277, %279 : vector<8x32xf32>
    %283 = arith.addf %281, %282 : vector<8x32xf32>
    %284 = math.tanh %283 : vector<8x32xf32>
    %285 = arith.mulf %280, %284 : vector<8x32xf32>
    %286 = tpu.concatenate %226, %246 in 1 : vector<8x32xf32>, vector<8x32xf32> -> vector<8x64xf32>
    %287 = arith.truncf %286 : vector<8x64xf32> to vector<8x64xbf16>
    %cst_39 = arith.constant dense<0.000000e+00> : vector<8x128xf32>
    %288 = tpu.matmul %287, %3, %cst_39 {dimension_numbers = #tpu.dot_dimension_numbers<[1], [0], [0], [1], [0, 0, 1, 1], [], []>} : vector<8x64xbf16>, vector<64x128xbf16>, vector<8x128xf32> -> vector<8x128xf32>
    %289 = vector.broadcast %6 : vector<1x128xf32> to vector<8x128xf32>
    %290 = arith.addf %288, %289 : vector<8x128xf32>
    %291 = arith.negf %290 : vector<8x128xf32>
    %292 = math.exp %291 : vector<8x128xf32>
    %cst_40 = arith.constant 1.000000e+00 : f32
    %293 = vector.broadcast %cst_40 : f32 to vector<8x128xf32>
    %294 = arith.addf %293, %292 : vector<8x128xf32>
    %295 = arith.divf %293, %294 : vector<8x128xf32>
    %296 = math.tanh %290 : vector<8x128xf32>
    %297 = vector.extract_strided_slice %295 {offsets = [0, 0], sizes = [8, 32], strides = [1, 1]} : vector<8x128xf32> to vector<8x32xf32>
    %298 = vector.extract_strided_slice %295 {offsets = [0, 32], sizes = [8, 32], strides = [1, 1]} : vector<8x128xf32> to vector<8x32xf32>
    %299 = vector.extract_strided_slice %296 {offsets = [0, 64], sizes = [8, 32], strides = [1, 1]} : vector<8x128xf32> to vector<8x32xf32>
    %300 = vector.extract_strided_slice %295 {offsets = [0, 96], sizes = [8, 32], strides = [1, 1]} : vector<8x128xf32> to vector<8x32xf32>
    %301 = arith.mulf %298, %244 : vector<8x32xf32>
    %302 = arith.mulf %297, %299 : vector<8x32xf32>
    %303 = arith.addf %301, %302 : vector<8x32xf32>
    %304 = math.tanh %303 : vector<8x32xf32>
    %305 = arith.mulf %300, %304 : vector<8x32xf32>
    %306 = vector.extract_strided_slice %10 {offsets = [48, 0], sizes = [8, 128], strides = [1, 1]} : vector<64x128xf32> to vector<8x128xf32>
    %307 = arith.truncf %265 : vector<8x32xf32> to vector<8x32xbf16>
    %cst_41 = arith.constant dense<0.000000e+00> : vector<8x128xf32>
    %308 = tpu.matmul %307, %1, %cst_41 {dimension_numbers = #tpu.dot_dimension_numbers<[1], [0], [0], [1], [0, 0, 1, 1], [], []>} : vector<8x32xbf16>, vector<32x128xbf16>, vector<8x128xf32> -> vector<8x128xf32>
    %309 = arith.addf %306, %308 : vector<8x128xf32>
    %310 = arith.negf %309 : vector<8x128xf32>
    %311 = math.exp %310 : vector<8x128xf32>
    %cst_42 = arith.constant 1.000000e+00 : f32
    %312 = vector.broadcast %cst_42 : f32 to vector<8x128xf32>
    %313 = arith.addf %312, %311 : vector<8x128xf32>
    %314 = arith.divf %312, %313 : vector<8x128xf32>
    %315 = math.tanh %309 : vector<8x128xf32>
    %316 = vector.extract_strided_slice %314 {offsets = [0, 0], sizes = [8, 32], strides = [1, 1]} : vector<8x128xf32> to vector<8x32xf32>
    %317 = vector.extract_strided_slice %314 {offsets = [0, 32], sizes = [8, 32], strides = [1, 1]} : vector<8x128xf32> to vector<8x32xf32>
    %318 = vector.extract_strided_slice %315 {offsets = [0, 64], sizes = [8, 32], strides = [1, 1]} : vector<8x128xf32> to vector<8x32xf32>
    %319 = vector.extract_strided_slice %314 {offsets = [0, 96], sizes = [8, 32], strides = [1, 1]} : vector<8x128xf32> to vector<8x32xf32>
    %320 = arith.mulf %317, %263 : vector<8x32xf32>
    %321 = arith.mulf %316, %318 : vector<8x32xf32>
    %322 = arith.addf %320, %321 : vector<8x32xf32>
    %323 = math.tanh %322 : vector<8x32xf32>
    %324 = arith.mulf %319, %323 : vector<8x32xf32>
    %325 = tpu.concatenate %265, %285 in 1 : vector<8x32xf32>, vector<8x32xf32> -> vector<8x64xf32>
    %326 = arith.truncf %325 : vector<8x64xf32> to vector<8x64xbf16>
    %cst_43 = arith.constant dense<0.000000e+00> : vector<8x128xf32>
    %327 = tpu.matmul %326, %2, %cst_43 {dimension_numbers = #tpu.dot_dimension_numbers<[1], [0], [0], [1], [0, 0, 1, 1], [], []>} : vector<8x64xbf16>, vector<64x128xbf16>, vector<8x128xf32> -> vector<8x128xf32>
    %328 = vector.broadcast %5 : vector<1x128xf32> to vector<8x128xf32>
    %329 = arith.addf %327, %328 : vector<8x128xf32>
    %330 = arith.negf %329 : vector<8x128xf32>
    %331 = math.exp %330 : vector<8x128xf32>
    %cst_44 = arith.constant 1.000000e+00 : f32
    %332 = vector.broadcast %cst_44 : f32 to vector<8x128xf32>
    %333 = arith.addf %332, %331 : vector<8x128xf32>
    %334 = arith.divf %332, %333 : vector<8x128xf32>
    %335 = math.tanh %329 : vector<8x128xf32>
    %336 = vector.extract_strided_slice %334 {offsets = [0, 0], sizes = [8, 32], strides = [1, 1]} : vector<8x128xf32> to vector<8x32xf32>
    %337 = vector.extract_strided_slice %334 {offsets = [0, 32], sizes = [8, 32], strides = [1, 1]} : vector<8x128xf32> to vector<8x32xf32>
    %338 = vector.extract_strided_slice %335 {offsets = [0, 64], sizes = [8, 32], strides = [1, 1]} : vector<8x128xf32> to vector<8x32xf32>
    %339 = vector.extract_strided_slice %334 {offsets = [0, 96], sizes = [8, 32], strides = [1, 1]} : vector<8x128xf32> to vector<8x32xf32>
    %340 = arith.mulf %337, %283 : vector<8x32xf32>
    %341 = arith.mulf %336, %338 : vector<8x32xf32>
    %342 = arith.addf %340, %341 : vector<8x32xf32>
    %343 = math.tanh %342 : vector<8x32xf32>
    %344 = arith.mulf %339, %343 : vector<8x32xf32>
    %345 = tpu.concatenate %285, %305 in 1 : vector<8x32xf32>, vector<8x32xf32> -> vector<8x64xf32>
    %346 = arith.truncf %345 : vector<8x64xf32> to vector<8x64xbf16>
    %cst_45 = arith.constant dense<0.000000e+00> : vector<8x128xf32>
    %347 = tpu.matmul %346, %3, %cst_45 {dimension_numbers = #tpu.dot_dimension_numbers<[1], [0], [0], [1], [0, 0, 1, 1], [], []>} : vector<8x64xbf16>, vector<64x128xbf16>, vector<8x128xf32> -> vector<8x128xf32>
    %348 = vector.broadcast %6 : vector<1x128xf32> to vector<8x128xf32>
    %349 = arith.addf %347, %348 : vector<8x128xf32>
    %350 = arith.negf %349 : vector<8x128xf32>
    %351 = math.exp %350 : vector<8x128xf32>
    %cst_46 = arith.constant 1.000000e+00 : f32
    %352 = vector.broadcast %cst_46 : f32 to vector<8x128xf32>
    %353 = arith.addf %352, %351 : vector<8x128xf32>
    %354 = arith.divf %352, %353 : vector<8x128xf32>
    %355 = math.tanh %349 : vector<8x128xf32>
    %356 = vector.extract_strided_slice %354 {offsets = [0, 0], sizes = [8, 32], strides = [1, 1]} : vector<8x128xf32> to vector<8x32xf32>
    %357 = vector.extract_strided_slice %354 {offsets = [0, 32], sizes = [8, 32], strides = [1, 1]} : vector<8x128xf32> to vector<8x32xf32>
    %358 = vector.extract_strided_slice %355 {offsets = [0, 64], sizes = [8, 32], strides = [1, 1]} : vector<8x128xf32> to vector<8x32xf32>
    %359 = vector.extract_strided_slice %354 {offsets = [0, 96], sizes = [8, 32], strides = [1, 1]} : vector<8x128xf32> to vector<8x32xf32>
    %360 = arith.mulf %357, %303 : vector<8x32xf32>
    %361 = arith.mulf %356, %358 : vector<8x32xf32>
    %362 = arith.addf %360, %361 : vector<8x32xf32>
    %363 = math.tanh %362 : vector<8x32xf32>
    %364 = arith.mulf %359, %363 : vector<8x32xf32>
    %365 = vector.extract_strided_slice %10 {offsets = [56, 0], sizes = [8, 128], strides = [1, 1]} : vector<64x128xf32> to vector<8x128xf32>
    %366 = arith.truncf %324 : vector<8x32xf32> to vector<8x32xbf16>
    %cst_47 = arith.constant dense<0.000000e+00> : vector<8x128xf32>
    %367 = tpu.matmul %366, %1, %cst_47 {dimension_numbers = #tpu.dot_dimension_numbers<[1], [0], [0], [1], [0, 0, 1, 1], [], []>} : vector<8x32xbf16>, vector<32x128xbf16>, vector<8x128xf32> -> vector<8x128xf32>
    %368 = arith.addf %365, %367 : vector<8x128xf32>
    %369 = arith.negf %368 : vector<8x128xf32>
    %370 = math.exp %369 : vector<8x128xf32>
    %cst_48 = arith.constant 1.000000e+00 : f32
    %371 = vector.broadcast %cst_48 : f32 to vector<8x128xf32>
    %372 = arith.addf %371, %370 : vector<8x128xf32>
    %373 = arith.divf %371, %372 : vector<8x128xf32>
    %374 = math.tanh %368 : vector<8x128xf32>
    %375 = vector.extract_strided_slice %373 {offsets = [0, 0], sizes = [8, 32], strides = [1, 1]} : vector<8x128xf32> to vector<8x32xf32>
    %376 = vector.extract_strided_slice %373 {offsets = [0, 32], sizes = [8, 32], strides = [1, 1]} : vector<8x128xf32> to vector<8x32xf32>
    %377 = vector.extract_strided_slice %374 {offsets = [0, 64], sizes = [8, 32], strides = [1, 1]} : vector<8x128xf32> to vector<8x32xf32>
    %378 = vector.extract_strided_slice %373 {offsets = [0, 96], sizes = [8, 32], strides = [1, 1]} : vector<8x128xf32> to vector<8x32xf32>
    %379 = arith.mulf %376, %322 : vector<8x32xf32>
    %380 = arith.mulf %375, %377 : vector<8x32xf32>
    %381 = arith.addf %379, %380 : vector<8x32xf32>
    %382 = math.tanh %381 : vector<8x32xf32>
    %383 = arith.mulf %378, %382 : vector<8x32xf32>
    %384 = tpu.concatenate %324, %344 in 1 : vector<8x32xf32>, vector<8x32xf32> -> vector<8x64xf32>
    %385 = arith.truncf %384 : vector<8x64xf32> to vector<8x64xbf16>
    %cst_49 = arith.constant dense<0.000000e+00> : vector<8x128xf32>
    %386 = tpu.matmul %385, %2, %cst_49 {dimension_numbers = #tpu.dot_dimension_numbers<[1], [0], [0], [1], [0, 0, 1, 1], [], []>} : vector<8x64xbf16>, vector<64x128xbf16>, vector<8x128xf32> -> vector<8x128xf32>
    %387 = vector.broadcast %5 : vector<1x128xf32> to vector<8x128xf32>
    %388 = arith.addf %386, %387 : vector<8x128xf32>
    %389 = arith.negf %388 : vector<8x128xf32>
    %390 = math.exp %389 : vector<8x128xf32>
    %cst_50 = arith.constant 1.000000e+00 : f32
    %391 = vector.broadcast %cst_50 : f32 to vector<8x128xf32>
    %392 = arith.addf %391, %390 : vector<8x128xf32>
    %393 = arith.divf %391, %392 : vector<8x128xf32>
    %394 = math.tanh %388 : vector<8x128xf32>
    %395 = vector.extract_strided_slice %393 {offsets = [0, 0], sizes = [8, 32], strides = [1, 1]} : vector<8x128xf32> to vector<8x32xf32>
    %396 = vector.extract_strided_slice %393 {offsets = [0, 32], sizes = [8, 32], strides = [1, 1]} : vector<8x128xf32> to vector<8x32xf32>
    %397 = vector.extract_strided_slice %394 {offsets = [0, 64], sizes = [8, 32], strides = [1, 1]} : vector<8x128xf32> to vector<8x32xf32>
    %398 = vector.extract_strided_slice %393 {offsets = [0, 96], sizes = [8, 32], strides = [1, 1]} : vector<8x128xf32> to vector<8x32xf32>
    %399 = arith.mulf %396, %342 : vector<8x32xf32>
    %400 = arith.mulf %395, %397 : vector<8x32xf32>
    %401 = arith.addf %399, %400 : vector<8x32xf32>
    %402 = math.tanh %401 : vector<8x32xf32>
    %403 = arith.mulf %398, %402 : vector<8x32xf32>
    %404 = tpu.concatenate %344, %364 in 1 : vector<8x32xf32>, vector<8x32xf32> -> vector<8x64xf32>
    %405 = arith.truncf %404 : vector<8x64xf32> to vector<8x64xbf16>
    %cst_51 = arith.constant dense<0.000000e+00> : vector<8x128xf32>
    %406 = tpu.matmul %405, %3, %cst_51 {dimension_numbers = #tpu.dot_dimension_numbers<[1], [0], [0], [1], [0, 0, 1, 1], [], []>} : vector<8x64xbf16>, vector<64x128xbf16>, vector<8x128xf32> -> vector<8x128xf32>
    %407 = vector.broadcast %6 : vector<1x128xf32> to vector<8x128xf32>
    %408 = arith.addf %406, %407 : vector<8x128xf32>
    %409 = arith.negf %408 : vector<8x128xf32>
    %410 = math.exp %409 : vector<8x128xf32>
    %cst_52 = arith.constant 1.000000e+00 : f32
    %411 = vector.broadcast %cst_52 : f32 to vector<8x128xf32>
    %412 = arith.addf %411, %410 : vector<8x128xf32>
    %413 = arith.divf %411, %412 : vector<8x128xf32>
    %414 = math.tanh %408 : vector<8x128xf32>
    %415 = vector.extract_strided_slice %413 {offsets = [0, 0], sizes = [8, 32], strides = [1, 1]} : vector<8x128xf32> to vector<8x32xf32>
    %416 = vector.extract_strided_slice %413 {offsets = [0, 32], sizes = [8, 32], strides = [1, 1]} : vector<8x128xf32> to vector<8x32xf32>
    %417 = vector.extract_strided_slice %414 {offsets = [0, 64], sizes = [8, 32], strides = [1, 1]} : vector<8x128xf32> to vector<8x32xf32>
    %418 = vector.extract_strided_slice %413 {offsets = [0, 96], sizes = [8, 32], strides = [1, 1]} : vector<8x128xf32> to vector<8x32xf32>
    %419 = arith.mulf %416, %362 : vector<8x32xf32>
    %420 = arith.mulf %415, %417 : vector<8x32xf32>
    %421 = arith.addf %419, %420 : vector<8x32xf32>
    %422 = math.tanh %421 : vector<8x32xf32>
    %423 = arith.mulf %418, %422 : vector<8x32xf32>
    %424 = tpu.concatenate %383, %403 in 1 : vector<8x32xf32>, vector<8x32xf32> -> vector<8x64xf32>
    %425 = arith.truncf %424 : vector<8x64xf32> to vector<8x64xbf16>
    %cst_53 = arith.constant dense<0.000000e+00> : vector<8x128xf32>
    %426 = tpu.matmul %425, %2, %cst_53 {dimension_numbers = #tpu.dot_dimension_numbers<[1], [0], [0], [1], [0, 0, 1, 1], [], []>} : vector<8x64xbf16>, vector<64x128xbf16>, vector<8x128xf32> -> vector<8x128xf32>
    %427 = vector.broadcast %5 : vector<1x128xf32> to vector<8x128xf32>
    %428 = arith.addf %426, %427 : vector<8x128xf32>
    %429 = arith.negf %428 : vector<8x128xf32>
    %430 = math.exp %429 : vector<8x128xf32>
    %cst_54 = arith.constant 1.000000e+00 : f32
    %431 = vector.broadcast %cst_54 : f32 to vector<8x128xf32>
    %432 = arith.addf %431, %430 : vector<8x128xf32>
    %433 = arith.divf %431, %432 : vector<8x128xf32>
    %434 = math.tanh %428 : vector<8x128xf32>
    %435 = vector.extract_strided_slice %433 {offsets = [0, 0], sizes = [8, 32], strides = [1, 1]} : vector<8x128xf32> to vector<8x32xf32>
    %436 = vector.extract_strided_slice %433 {offsets = [0, 32], sizes = [8, 32], strides = [1, 1]} : vector<8x128xf32> to vector<8x32xf32>
    %437 = vector.extract_strided_slice %434 {offsets = [0, 64], sizes = [8, 32], strides = [1, 1]} : vector<8x128xf32> to vector<8x32xf32>
    %438 = vector.extract_strided_slice %433 {offsets = [0, 96], sizes = [8, 32], strides = [1, 1]} : vector<8x128xf32> to vector<8x32xf32>
    %439 = arith.mulf %436, %401 : vector<8x32xf32>
    %440 = arith.mulf %435, %437 : vector<8x32xf32>
    %441 = arith.addf %439, %440 : vector<8x32xf32>
    %442 = math.tanh %441 : vector<8x32xf32>
    %443 = arith.mulf %438, %442 : vector<8x32xf32>
    %444 = tpu.concatenate %403, %423 in 1 : vector<8x32xf32>, vector<8x32xf32> -> vector<8x64xf32>
    %445 = arith.truncf %444 : vector<8x64xf32> to vector<8x64xbf16>
    %cst_55 = arith.constant dense<0.000000e+00> : vector<8x128xf32>
    %446 = tpu.matmul %445, %3, %cst_55 {dimension_numbers = #tpu.dot_dimension_numbers<[1], [0], [0], [1], [0, 0, 1, 1], [], []>} : vector<8x64xbf16>, vector<64x128xbf16>, vector<8x128xf32> -> vector<8x128xf32>
    %447 = vector.broadcast %6 : vector<1x128xf32> to vector<8x128xf32>
    %448 = arith.addf %446, %447 : vector<8x128xf32>
    %449 = arith.negf %448 : vector<8x128xf32>
    %450 = math.exp %449 : vector<8x128xf32>
    %cst_56 = arith.constant 1.000000e+00 : f32
    %451 = vector.broadcast %cst_56 : f32 to vector<8x128xf32>
    %452 = arith.addf %451, %450 : vector<8x128xf32>
    %453 = arith.divf %451, %452 : vector<8x128xf32>
    %454 = math.tanh %448 : vector<8x128xf32>
    %455 = vector.extract_strided_slice %453 {offsets = [0, 0], sizes = [8, 32], strides = [1, 1]} : vector<8x128xf32> to vector<8x32xf32>
    %456 = vector.extract_strided_slice %453 {offsets = [0, 32], sizes = [8, 32], strides = [1, 1]} : vector<8x128xf32> to vector<8x32xf32>
    %457 = vector.extract_strided_slice %454 {offsets = [0, 64], sizes = [8, 32], strides = [1, 1]} : vector<8x128xf32> to vector<8x32xf32>
    %458 = vector.extract_strided_slice %453 {offsets = [0, 96], sizes = [8, 32], strides = [1, 1]} : vector<8x128xf32> to vector<8x32xf32>
    %459 = arith.mulf %456, %421 : vector<8x32xf32>
    %460 = arith.mulf %455, %457 : vector<8x32xf32>
    %461 = arith.addf %459, %460 : vector<8x32xf32>
    %462 = math.tanh %461 : vector<8x32xf32>
    %463 = arith.mulf %458, %462 : vector<8x32xf32>
    %464 = tpu.concatenate %443, %463 in 1 : vector<8x32xf32>, vector<8x32xf32> -> vector<8x64xf32>
    %465 = arith.truncf %464 : vector<8x64xf32> to vector<8x64xbf16>
    %cst_57 = arith.constant dense<0.000000e+00> : vector<8x128xf32>
    %466 = tpu.matmul %465, %3, %cst_57 {dimension_numbers = #tpu.dot_dimension_numbers<[1], [0], [0], [1], [0, 0, 1, 1], [], []>} : vector<8x64xbf16>, vector<64x128xbf16>, vector<8x128xf32> -> vector<8x128xf32>
    %467 = vector.broadcast %6 : vector<1x128xf32> to vector<8x128xf32>
    %468 = arith.addf %466, %467 : vector<8x128xf32>
    %469 = arith.negf %468 : vector<8x128xf32>
    %470 = math.exp %469 : vector<8x128xf32>
    %cst_58 = arith.constant 1.000000e+00 : f32
    %471 = vector.broadcast %cst_58 : f32 to vector<8x128xf32>
    %472 = arith.addf %471, %470 : vector<8x128xf32>
    %473 = arith.divf %471, %472 : vector<8x128xf32>
    %474 = math.tanh %468 : vector<8x128xf32>
    %475 = vector.extract_strided_slice %473 {offsets = [0, 0], sizes = [8, 32], strides = [1, 1]} : vector<8x128xf32> to vector<8x32xf32>
    %476 = vector.extract_strided_slice %473 {offsets = [0, 32], sizes = [8, 32], strides = [1, 1]} : vector<8x128xf32> to vector<8x32xf32>
    %477 = vector.extract_strided_slice %474 {offsets = [0, 64], sizes = [8, 32], strides = [1, 1]} : vector<8x128xf32> to vector<8x32xf32>
    %478 = vector.extract_strided_slice %473 {offsets = [0, 96], sizes = [8, 32], strides = [1, 1]} : vector<8x128xf32> to vector<8x32xf32>
    %479 = arith.mulf %476, %461 : vector<8x32xf32>
    %480 = arith.mulf %475, %477 : vector<8x32xf32>
    %481 = arith.addf %479, %480 : vector<8x32xf32>
    %482 = math.tanh %481 : vector<8x32xf32>
    %483 = arith.mulf %478, %482 : vector<8x32xf32>
    %c0_59 = arith.constant 0 : index
    %c0_60 = arith.constant 0 : index
    %484 = vector.load %arg3[%c0_59, %c0_60] : memref<288x256xbf16, #tpu.memory_space<vmem>>, vector<32x256xbf16>
    %c32 = arith.constant 32 : index
    %c0_61 = arith.constant 0 : index
    %485 = vector.load %arg3[%c32, %c0_61] : memref<288x256xbf16, #tpu.memory_space<vmem>>, vector<256x256xbf16>
    %c0_62 = arith.constant 0 : index
    %c0_63 = arith.constant 0 : index
    %486 = vector.load %arg4[%c0_62, %c0_63] : memref<2x256xf32, #tpu.memory_space<vmem>>, vector<1x256xf32>
    %c1_64 = arith.constant 1 : index
    %c0_65 = arith.constant 0 : index
    %487 = vector.load %arg4[%c1_64, %c0_65] : memref<2x256xf32, #tpu.memory_space<vmem>>, vector<1x256xf32>
    %488 = arith.truncf %483 : vector<8x32xf32> to vector<8x32xbf16>
    %cst_66 = arith.constant dense<0.000000e+00> : vector<8x256xf32>
    %489 = tpu.matmul %488, %484, %cst_66 {dimension_numbers = #tpu.dot_dimension_numbers<[1], [0], [0], [1], [0, 0, 1, 1], [], []>} : vector<8x32xbf16>, vector<32x256xbf16>, vector<8x256xf32> -> vector<8x256xf32>
    %490 = vector.broadcast %486 : vector<1x256xf32> to vector<8x256xf32>
    %491 = arith.addf %489, %490 : vector<8x256xf32>
    %cst_67 = arith.constant 0.000000e+00 : f32
    %492 = vector.broadcast %cst_67 : f32 to vector<8x256xf32>
    %493 = arith.maximumf %491, %492 : vector<8x256xf32>
    %494 = arith.truncf %493 : vector<8x256xf32> to vector<8x256xbf16>
    %cst_68 = arith.constant dense<0.000000e+00> : vector<8x256xf32>
    %495 = tpu.matmul %494, %485, %cst_68 {dimension_numbers = #tpu.dot_dimension_numbers<[1], [0], [0], [1], [0, 0, 1, 1], [], []>} : vector<8x256xbf16>, vector<256x256xbf16>, vector<8x256xf32> -> vector<8x256xf32>
    %496 = vector.broadcast %487 : vector<1x256xf32> to vector<8x256xf32>
    %497 = arith.addf %495, %496 : vector<8x256xf32>
    %cst_69 = arith.constant dense<0xFF800000> : vector<8xf32>
    %498 = vector.multi_reduction <maximumf>, %497, %cst_69 [1] : vector<8x256xf32> to vector<8xf32>
    %499 = vector.shape_cast %498 : vector<8xf32> to vector<8x1xf32>
    %500 = vector.broadcast %499 : vector<8x1xf32> to vector<8x256xf32>
    %501 = arith.subf %497, %500 : vector<8x256xf32>
    %502 = math.exp %501 : vector<8x256xf32>
    %cst_70 = arith.constant dense<0.000000e+00> : vector<8xf32>
    %503 = vector.multi_reduction <add>, %502, %cst_70 [1] : vector<8x256xf32> to vector<8xf32>
    %504 = vector.shape_cast %503 : vector<8xf32> to vector<8x1xf32>
    %505 = tpu.reciprocal %504 {approx = true} : vector<8x1xf32> -> vector<8x1xf32>
    %506 = vector.broadcast %505 : vector<8x1xf32> to vector<8x256xf32>
    %507 = arith.mulf %502, %506 : vector<8x256xf32>
    %c0_71 = arith.constant 0 : index
    %c0_72 = arith.constant 0 : index
    %508 = vector.load %arg5[%c0_71, %c0_72] : memref<8x256xf32, #tpu.memory_space<vmem>>, vector<8x256xf32>
    tpu.vector_store %arg5[%c0_71, %c0_72], %507 {strides = array<i32>} : memref<8x256xf32, #tpu.memory_space<vmem>>, vector<8x256xf32>,
    return
  }
}

</mosaic_0001>

<llo_original>
// kernel: tpu_custom_call.1
$region0: #{tpu_custom_call.1}
  #allocation0 [shape = 'u32[]', space=smem, size = 0x4, offset = 0x4, fixed_abs, tag = 'smem constant byte address 0x4 - core index']
  #allocation1 [shape = 'u32[144,128]{1,0:T(1,128)}', space=vmem, size = 0x12000, scoped, tag = 'internal scratch']
  %s0 = inlined_call_operand.vmem [shape: bf16[64,16], index: 0, kind: input, shape index: {}]
  %s1 = inlined_call_operand.hbm [shape: bf16[176,128], index: 1, kind: input, shape index: {}]
  %s2 = inlined_call_operand.vmem [shape: f32[3,128], index: 2, kind: input, shape index: {}]
  %s3 = inlined_call_operand.hbm [shape: bf16[288,256], index: 3, kind: input, shape index: {}]
  %s4 = inlined_call_operand.vmem [shape: f32[2,256], index: 4, kind: input, shape index: {}]
  %s5 = inlined_call_operand.hbm [shape: f32[8,256], index: 5, kind: output, shape index: {}]
  %s6 = sld [smem:[#allocation0]]
  $region38: #{tpu_custom_call.1} parent=0
    _
  %s8 = ssub.s32 1, %s6
  %s9 = scalar_select 0, %s8, %s6
  $region1: #{tpu_custom_call.1} parent=0
    #allocation2 [shape = 'u8[45056]{0}', space=vmem, size = 0xb000, scoped, tag = 'input window, operand 1, single buffered']
    #allocation3 [shape = 's32[1]{0}', space=sflag, size = 0x4, scoped, tag = 'scoped memory for tpu_custom_call.1']
    #allocation4 [shape = 's32[1]{0}', space=sflag, size = 0x4, scoped, tag = 'scoped memory for tpu_custom_call.1']
    #allocation5 [shape = 'u8[147456]{0}', space=vmem, size = 0x24000, scoped, tag = 'input window, operand 3, single buffered']
    #allocation6 [shape = 's32[1]{0}', space=sflag, size = 0x4, scoped, tag = 'scoped memory for tpu_custom_call.1']
    #allocation7 [shape = 'u8[8192]{0}', space=vmem, size = 0x2000, scoped, tag = 'output window, operand 0, single buffered']
    %10 = vsyncpa [#allocation3], 0
    %11 = vsyncpa [#allocation6], 0
    %12 = vsyncpa [#allocation4], 0
    // Predicated region
    $region2: #{tpu_custom_call.1} parent=1 // pred_check
      _
    $region3: #{tpu_custom_call.1} parent=1 // pred_check_branch
      %14 = sbr.rel (0) target = $region5
    $region4: #{tpu_custom_call.1} parent=1 // pred_region
      _
    $region5: #{tpu_custom_call.1} parent=1 // pred_fallthru
      _
    // Predicated region
    $region6: #{tpu_custom_call.1} parent=1 // pred_check
      _
    $region7: #{tpu_custom_call.1} parent=1 // pred_check_branch
      %16 = sbr.rel (0) target = $region9
    $region8: #{tpu_custom_call.1} parent=1 // pred_region
      %s18 = ssub.s32 1408, 1408
      %19 = vsyncadd [#allocation3], %s18
      %s20 = sshll.u32 [#allocation2], 4
      %s21 = int_to_ptr.vmem [resolvable:$true] %s20
      %26 = dma.hbm_to_vmem [thread:$0]  %s1, 1408, %s21, [#allocation3], 64, 64, 4
    $region9: #{tpu_custom_call.1} parent=1 // pred_fallthru
      _
    // Predicated region
    $region10: #{tpu_custom_call.1} parent=1 // pred_check
      _
    $region11: #{tpu_custom_call.1} parent=1 // pred_check_branch
      %28 = sbr.rel (0) target = $region13
    $region12: #{tpu_custom_call.1} parent=1 // pred_region
      _
    $region13: #{tpu_custom_call.1} parent=1 // pred_fallthru
      _
    // Predicated region
    $region14: #{tpu_custom_call.1} parent=1 // pred_check
      _
    $region15: #{tpu_custom_call.1} parent=1 // pred_check_branch
      %30 = sbr.rel (0) target = $region17
    $region16: #{tpu_custom_call.1} parent=1 // pred_region
      %s32 = ssub.s32 4608, 4608
      %33 = vsyncadd [#allocation6], %s32
      %s34 = sshll.u32 [#allocation5], 4
      %s35 = int_to_ptr.vmem [resolvable:$true] %s34
      %40 = dma.hbm_to_vmem [thread:$0]  %s3, 4608, %s35, [#allocation6], 128, 128, 8
    $region17: #{tpu_custom_call.1} parent=1 // pred_fallthru
      _
    // Predicated region
    $region18: #{tpu_custom_call.1} parent=1 // pred_check
      _
    $region19: #{tpu_custom_call.1} parent=1 // pred_check_branch
      %42 = sbr.rel (0) target = $region21
    $region20: #{tpu_custom_call.1} parent=1 // pred_region
      _
    $region21: #{tpu_custom_call.1} parent=1 // pred_fallthru
      _
    // Predicated region
    $region22: #{tpu_custom_call.1} parent=1 // pred_check
      _
    $region23: #{tpu_custom_call.1} parent=1 // pred_check_branch
      %44 = sbr.rel (0) target = $region25
    $region24: #{tpu_custom_call.1} parent=1 // pred_region
      %45 = dma.done [#allocation3], 1408
    $region25: #{tpu_custom_call.1} parent=1 // pred_fallthru
      _
    // Predicated region
    $region26: #{tpu_custom_call.1} parent=1 // pred_check
      _
    $region27: #{tpu_custom_call.1} parent=1 // pred_check_branch
      %47 = sbr.rel (0) target = $region29
    $region28: #{tpu_custom_call.1} parent=1 // pred_region
      %48 = dma.done [#allocation6], 4608
    $region29: #{tpu_custom_call.1} parent=1 // pred_fallthru
      _
    %v50 = vld [vmem:[#allocation2] sm:$0xf]
    %v51 = vld [vmem:[#allocation2 + $0x4] sm:$0xf]
    %v52 = vld [vmem:[#allocation2 + $0x8] sm:$0xf]
    %v53 = vld [vmem:[#allocation2 + $0xc] sm:$0xf]
    %v54 = vld [vmem:[#allocation2 + $0x10] sm:$0xf]
    %v55 = vld [vmem:[#allocation2 + $0x14] sm:$0xf]
    %v56 = vld [vmem:[#allocation2 + $0x18] sm:$0xf]
    %v57 = vld [vmem:[#allocation2 + $0x1c] sm:$0xf]
    %v58 = vld [vmem:[#allocation2 + $0x20] sm:$0xf]
    %v59 = vld [vmem:[#allocation2 + $0x24] sm:$0xf]
    %v60 = vld [vmem:[#allocation2 + $0x28] sm:$0xf]
    %v61 = vld [vmem:[#allocation2 + $0x2c] sm:$0xf]
    %v62 = vld [vmem:[#allocation2 + $0x30] sm:$0xf]
    %v63 = vld [vmem:[#allocation2 + $0x34] sm:$0xf]
    %v64 = vld [vmem:[#allocation2 + $0x38] sm:$0xf]
    %v65 = vld [vmem:[#allocation2 + $0x3c] sm:$0xf]
    %v66 = vld [vmem:[#allocation2 + $0x40] sm:$0xf]
    %v67 = vld [vmem:[#allocation2 + $0x44] sm:$0xf]
    %v68 = vld [vmem:[#allocation2 + $0x48] sm:$0xf]
    %v69 = vld [vmem:[#allocation2 + $0x4c] sm:$0xf]
    %v70 = vld [vmem:[#allocation2 + $0x50] sm:$0xf]
    %v71 = vld [vmem:[#allocation2 + $0x54] sm:$0xf]
    %v72 = vld [vmem:[%s2] sm:$0x1]
    %v73 = vld [vmem:[%s2 + $0x1] sm:$0x1]
    %v74 = vld [vmem:[%s2 + $0x2] sm:$0x1]
    %v75 = vld [vmem:[%s0] sm:$0xf]
    %v76 = vld [vmem:[%s0 + $0x4] sm:$0xf]
    %v77 = vld [vmem:[%s0 + $0x8] sm:$0xf]
    %v78 = vld [vmem:[%s0 + $0xc] sm:$0xf]
    %v79 = vld [vmem:[%s0 + $0x10] sm:$0xf]
    %v80 = vld [vmem:[%s0 + $0x14] sm:$0xf]
    %v81 = vld [vmem:[%s0 + $0x18] sm:$0xf]
    %v82 = vld [vmem:[%s0 + $0x1c] sm:$0xf]
    %v83 = vlaneseq
    %v84 = vshrl.u32 %v83, 7
    %v85 = vsub.s32 0, %v84
    %v86 = vrot.slane %v72, %v85
    %v95 = vunpack.c.l.b16 %v75
    %v96 = vunpack.c.l.b16 %v76
    %v97 = vunpack.c.l.b16 %v77
    %v98 = vunpack.c.l.b16 %v78
    %v99 = vunpack.c.l.b16 %v79
    %v100 = vunpack.c.l.b16 %v80
    %v101 = vunpack.c.l.b16 %v81
    %v102 = vunpack.c.l.b16 %v82
    %v103 = vpack.c.b16 %v96, %v95
    %v104 = vpack.c.b16 %v98, %v97
    %v105 = vpack.c.b16 %v100, %v99
    %v106 = vpack.c.b16 %v102, %v101
    %v109 = vunpack.c.l.b16 %v50
    %v110 = vunpack.c.l.b16 %v51
    %v111 = vpack.c.b16 %v110, %v109
    %vm113 = vcmask 130048
    %v115 = vsel %vm113, %v103, 0
    %v118 = vsel %vm113, %v104, 0
    %v121 = vsel %vm113, %v105, 0
    %v124 = vsel %vm113, %v106, 0
    %126 = vmatprep.subr.bf16.mxu0 0
    %127 = vmatpush1.bf16.msra.mxu0 0
    %128 = vmatprep.subr.bf16.mxu0 0
    %129 = vmatpush1.bf16.msra.mxu0 0
    %130 = vmatprep.subr.bf16.mxu0 0
    %131 = vmatpush1.bf16.msra.mxu0 0
    %132 = vmatprep.subr.bf16.mxu0 0
    %133 = vmatpush1.bf16.msra.mxu0 0
    %134 = vmatprep.subr.bf16.mxu0 0
    %135 = vmatpush1.bf16.msra.mxu0 0
    %136 = vmatprep.subr.bf16.mxu0 0
    %137 = vmatpush1.bf16.msra.mxu0 0
    %138 = vmatprep.subr.bf16.mxu0 0
    %139 = vmatpush1.bf16.msra.mxu0 0
    %140 = vmatprep.subr.bf16.mxu0 0
    %141 = vmatpush1.bf16.msra.mxu0 %v111
    %142 = vmatprep.subr.bf16.mxu0 0
    %143 = vmatpush2.bf16.msra.mxu0 0
    %144 = vmatprep.subr.bf16.mxu0 0
    %145 = vmatpush2.bf16.msra.mxu0 0
    %146 = vmatprep.subr.bf16.mxu0 0
    %147 = vmatpush2.bf16.msra.mxu0 0
    %148 = vmatprep.subr.bf16.mxu0 0
    %149 = vmatpush2.bf16.msra.mxu0 0
    %150 = vmatprep.subr.bf16.mxu0 0
    %151 = vmatpush2.bf16.msra.mxu0 0
    %152 = vmatprep.subr.bf16.mxu0 0
    %153 = vmatpush2.bf16.msra.mxu0 0
    %154 = vmatprep.subr.bf16.mxu0 0
    %155 = vmatpush2.bf16.msra.mxu0 0
    %156 = vmatprep.subr.bf16.mxu0 0
    %157 = vmatpush2.bf16.msra.mxu0 0
    %158 = vmatprep.mubr.bf16.mxu0 0
    %159 = vmatmul.mubr.bf16.gmra.mxu0 %v115
    %v160 = vpop.f32.mrf.mxu0
    %v161 = vadd.f32 %v86, %v160
    %v162 = vpop.f32.mrf.mxu0
    %v163 = vpop.f32.mrf.mxu0
    %v164 = vadd.f32 %v86, %v163
    %v165 = vpop.f32.mrf.mxu0
    %166 = vmatprep.mubr.bf16.mxu0 0
    %167 = vmatmul.mubr.bf16.gmra.mxu0 %v118
    %v168 = vpop.f32.mrf.mxu0
    %v169 = vadd.f32 %v86, %v168
    %v170 = vpop.f32.mrf.mxu0
    %v171 = vpop.f32.mrf.mxu0
    %v172 = vadd.f32 %v86, %v171
    %v173 = vpop.f32.mrf.mxu0
    %174 = vmatprep.mubr.bf16.mxu0 0
    %175 = vmatmul.mubr.bf16.gmra.mxu0 %v121
    %v176 = vpop.f32.mrf.mxu0
    %v177 = vadd.f32 %v86, %v176
    %v178 = vpop.f32.mrf.mxu0
    %v179 = vpop.f32.mrf.mxu0
    %v180 = vadd.f32 %v86, %v179
    %v181 = vpop.f32.mrf.mxu0
    %182 = vmatprep.mubr.bf16.mxu0 0
    %183 = vmatmul.mubr.bf16.gmra.mxu0 %v124
    %v184 = vpop.f32.mrf.mxu0
    %v185 = vadd.f32 %v86, %v184
    %v186 = vpop.f32.mrf.mxu0
    %v187 = vpop.f32.mrf.mxu0
    %v188 = vadd.f32 %v86, %v187
    %v189 = vpop.f32.mrf.mxu0
    %190 = vdwg.mxu0
    %v195 = vunpack.c.l.b16 %v52
    %v196 = vunpack.c.l.b16 %v53
    %v197 = vunpack.c.l.b16 %v54
    %v198 = vunpack.c.l.b16 %v55
    %v199 = vpack.c.b16 %v196, %v195
    %v200 = vpack.c.b16 %v198, %v197
    %vm203 = vcmask 261120
    %v205 = vsel %vm203, 0, 0
    %207 = vmatprep.subr.bf16.mxu0 0
    %208 = vmatpush1.bf16.msra.mxu0 0
    %209 = vmatprep.subr.bf16.mxu0 0
    %210 = vmatpush1.bf16.msra.mxu0 0
    %211 = vmatprep.subr.bf16.mxu0 0
    %212 = vmatpush1.bf16.msra.mxu0 0
    %213 = vmatprep.subr.bf16.mxu0 0
    %214 = vmatpush1.bf16.msra.mxu0 0
    %215 = vmatprep.subr.bf16.mxu0 0
    %216 = vmatpush1.bf16.msra.mxu0 0
    %217 = vmatprep.subr.bf16.mxu0 0
    %218 = vmatpush1.bf16.msra.mxu0 0
    %219 = vmatprep.subr.bf16.mxu0 0
    %220 = vmatpush1.bf16.msra.mxu0 %v200
    %221 = vmatprep.subr.bf16.mxu0 0
    %222 = vmatpush1.bf16.msra.mxu0 %v199
    %223 = vmatprep.subr.bf16.mxu0 0
    %224 = vmatpush2.bf16.msra.mxu0 0
    %225 = vmatprep.subr.bf16.mxu0 0
    %226 = vmatpush2.bf16.msra.mxu0 0
    %227 = vmatprep.subr.bf16.mxu0 0
    %228 = vmatpush2.bf16.msra.mxu0 0
    %229 = vmatprep.subr.bf16.mxu0 0
    %230 = vmatpush2.bf16.msra.mxu0 0
    %231 = vmatprep.subr.bf16.mxu0 0
    %232 = vmatpush2.bf16.msra.mxu0 0
    %233 = vmatprep.subr.bf16.mxu0 0
    %234 = vmatpush2.bf16.msra.mxu0 0
    %235 = vmatprep.subr.bf16.mxu0 0
    %236 = vmatpush2.bf16.msra.mxu0 0
    %237 = vmatprep.subr.bf16.mxu0 0
    %238 = vmatpush2.bf16.msra.mxu0 0
    %239 = vmatprep.mubr.bf16.mxu0 0
    %240 = vmatmul.mubr.bf16.gmra.mxu0 %v205
    %v241 = vpop.f32.mrf.mxu0
    %v242 = vadd.f32 0.0, %v241
    %v243 = vpop.f32.mrf.mxu0
    %v244 = vpop.f32.mrf.mxu0
    %v245 = vpop.f32.mrf.mxu0
    %246 = vdwg.mxu0
    %v247 = vadd.f32 %v161, %v242
    %v248 = vxor.u32 %v247, 2147483648
    %v249 = vmul.f32 %v248, 1.442695
    %v250 = vpow.pop %v249
    %v251 = vadd.f32 %v250, 1.0
    %v252 = vrcp.pop %v251
    %v253 = vmul.f32 1.0, %v252
    %v254 = vtanh.pop %v247
    %v255 = vmul.f32 %v253, 0.0
    %257 = vrot.lane.b32.xlu0 %v254, 64
    %v258 = vpop.permute.xlu0 %257
    %v260 = vmul.f32 %v253, %v258
    %262 = vrot.lane.b32.xlu0 %v260, 32
    %v263 = vpop.permute.xlu0 %262
    %v265 = vadd.f32 %v255, %v263
    %v266 = vtanh.pop %v265
    %268 = vrot.lane.b32.xlu0 %v266, 64
    %v269 = vpop.permute.xlu0 %268
    %v271 = vmul.f32 %v253, %v269
    %v272 = vpack.c.bf16 %v271, %v271
    %274 = vrot.lane.b32.xlu0 %v272, 32
    %v275 = vpop.permute.xlu0 %274
    %v277 = vsel %vm203, %v275, 0
    %279 = vmatprep.subr.bf16.mxu0 0
    %280 = vmatpush1.bf16.msra.mxu0 0
    %281 = vmatprep.subr.bf16.mxu0 0
    %282 = vmatpush1.bf16.msra.mxu0 0
    %283 = vmatprep.subr.bf16.mxu0 0
    %284 = vmatpush1.bf16.msra.mxu0 0
    %285 = vmatprep.subr.bf16.mxu0 0
    %286 = vmatpush1.bf16.msra.mxu0 0
    %287 = vmatprep.subr.bf16.mxu0 0
    %288 = vmatpush1.bf16.msra.mxu0 0
    %289 = vmatprep.subr.bf16.mxu0 0
    %290 = vmatpush1.bf16.msra.mxu0 0
    %291 = vmatprep.subr.bf16.mxu0 0
    %292 = vmatpush1.bf16.msra.mxu0 %v200
    %293 = vmatprep.subr.bf16.mxu0 0
    %294 = vmatpush1.bf16.msra.mxu0 %v199
    %295 = vmatprep.subr.bf16.mxu0 0
    %296 = vmatpush2.bf16.msra.mxu0 0
    %297 = vmatprep.subr.bf16.mxu0 0
    %298 = vmatpush2.bf16.msra.mxu0 0
    %299 = vmatprep.subr.bf16.mxu0 0
    %300 = vmatpush2.bf16.msra.mxu0 0
    %301 = vmatprep.subr.bf16.mxu0 0
    %302 = vmatpush2.bf16.msra.mxu0 0
    %303 = vmatprep.subr.bf16.mxu0 0
    %304 = vmatpush2.bf16.msra.mxu0 0
    %305 = vmatprep.subr.bf16.mxu0 0
    %306 = vmatpush2.bf16.msra.mxu0 0
    %307 = vmatprep.subr.bf16.mxu0 0
    %308 = vmatpush2.bf16.msra.mxu0 0
    %309 = vmatprep.subr.bf16.mxu0 0
    %310 = vmatpush2.bf16.msra.mxu0 0
    %311 = vmatprep.mubr.bf16.mxu0 0
    %312 = vmatmul.mubr.bf16.gmra.mxu0 %v277
    %v313 = vpop.f32.mrf.mxu0
    %v314 = vadd.f32 0.0, %v313
    %v315 = vpop.f32.mrf.mxu0
    %v316 = vpop.f32.mrf.mxu0
    %v317 = vpop.f32.mrf.mxu0
    %318 = vdwg.mxu0
    %v319 = vadd.f32 %v164, %v314
    %v320 = vxor.u32 %v319, 2147483648
    %v321 = vmul.f32 %v320, 1.442695
    %v322 = vpow.pop %v321
    %v323 = vadd.f32 %v322, 1.0
    %v324 = vrcp.pop %v323
    %v325 = vmul.f32 1.0, %v324
    %v326 = vtanh.pop %v319
    %v327 = vmul.f32 %v325, %v265
    %329 = vrot.lane.b32.xlu0 %v326, 64
    %v330 = vpop.permute.xlu0 %329
    %v332 = vmul.f32 %v325, %v330
    %334 = vrot.lane.b32.xlu0 %v332, 32
    %v335 = vpop.permute.xlu0 %334
    %v337 = vadd.f32 %v327, %v335
    %v338 = vtanh.pop %v337
    %340 = vrot.lane.b32.xlu0 %v338, 64
    %v341 = vpop.permute.xlu0 %340
    %v343 = vmul.f32 %v325, %v341
    %345 = vrot.lane.b32.xlu0 %v271, 32
    %v346 = vpop.permute.xlu0 %345
    %v348 = vsel %vm203, %v346, 0.0
    %v349 = vpack.c.bf16 %v348, %v348
    %v350 = vlaneseq
    %v351 = vshrl.u32 %v350, 7
    %v352 = vsub.s32 0, %v351
    %v353 = vrot.slane %v73, %v352
    %v362 = vunpack.c.l.b16 %v56
    %v363 = vunpack.c.l.b16 %v57
    %v364 = vunpack.c.l.b16 %v58
    %v365 = vunpack.c.l.b16 %v59
    %v366 = vunpack.c.l.b16 %v60
    %v367 = vunpack.c.l.b16 %v61
    %v368 = vunpack.c.l.b16 %v62
    %v369 = vunpack.c.l.b16 %v63
    %v370 = vpack.c.b16 %v363, %v362
    %v371 = vpack.c.b16 %v365, %v364
    %v372 = vpack.c.b16 %v367, %v366
    %v373 = vpack.c.b16 %v369, %v368
    %vm378 = vcmask 523264
    %v380 = vsel %vm378, %v349, 0
    %382 = vmatprep.subr.bf16.mxu0 0
    %383 = vmatpush1.bf16.msra.mxu0 0
    %384 = vmatprep.subr.bf16.mxu0 0
    %385 = vmatpush1.bf16.msra.mxu0 0
    %386 = vmatprep.subr.bf16.mxu0 0
    %387 = vmatpush1.bf16.msra.mxu0 0
    %388 = vmatprep.subr.bf16.mxu0 0
    %389 = vmatpush1.bf16.msra.mxu0 0
    %390 = vmatprep.subr.bf16.mxu0 0
    %391 = vmatpush1.bf16.msra.mxu0 %v373
    %392 = vmatprep.subr.bf16.mxu0 0
    %393 = vmatpush1.bf16.msra.mxu0 %v372
    %394 = vmatprep.subr.bf16.mxu0 0
    %395 = vmatpush1.bf16.msra.mxu0 %v371
    %396 = vmatprep.subr.bf16.mxu0 0
    %397 = vmatpush1.bf16.msra.mxu0 %v370
    %398 = vmatprep.subr.bf16.mxu0 0
    %399 = vmatpush2.bf16.msra.mxu0 0
    %400 = vmatprep.subr.bf16.mxu0 0
    %401 = vmatpush2.bf16.msra.mxu0 0
    %402 = vmatprep.subr.bf16.mxu0 0
    %403 = vmatpush2.bf16.msra.mxu0 0
    %404 = vmatprep.subr.bf16.mxu0 0
    %405 = vmatpush2.bf16.msra.mxu0 0
    %406 = vmatprep.subr.bf16.mxu0 0
    %407 = vmatpush2.bf16.msra.mxu0 0
    %408 = vmatprep.subr.bf16.mxu0 0
    %409 = vmatpush2.bf16.msra.mxu0 0
    %410 = vmatprep.subr.bf16.mxu0 0
    %411 = vmatpush2.bf16.msra.mxu0 0
    %412 = vmatprep.subr.bf16.mxu0 0
    %413 = vmatpush2.bf16.msra.mxu0 0
    %414 = vmatprep.mubr.bf16.mxu0 0
    %415 = vmatmul.mubr.bf16.gmra.mxu0 %v380
    %v416 = vpop.f32.mrf.mxu0
    %v417 = vadd.f32 %v353, %v416
    %v418 = vpop.f32.mrf.mxu0
    %v419 = vpop.f32.mrf.mxu0
    %v420 = vpop.f32.mrf.mxu0
    %421 = vdwg.mxu0
    %v422 = vxor.u32 %v417, 2147483648
    %v423 = vmul.f32 %v422, 1.442695
    %v424 = vpow.pop %v423
    %v425 = vadd.f32 %v424, 1.0
    %v426 = vrcp.pop %v425
    %v427 = vmul.f32 1.0, %v426
    %v428 = vtanh.pop %v417
    %v429 = vmul.f32 %v427, 0.0
    %431 = vrot.lane.b32.xlu0 %v428, 64
    %v432 = vpop.permute.xlu0 %431
    %v434 = vmul.f32 %v427, %v432
    %436 = vrot.lane.b32.xlu0 %v434, 32
    %v437 = vpop.permute.xlu0 %436
    %v439 = vadd.f32 %v429, %v437
    %v440 = vtanh.pop %v439
    %442 = vrot.lane.b32.xlu0 %v440, 64
    %v443 = vpop.permute.xlu0 %442
    %v445 = vmul.f32 %v427, %v443
    %v446 = vpack.c.bf16 %v343, %v343
    %448 = vrot.lane.b32.xlu0 %v446, 32
    %v449 = vpop.permute.xlu0 %448
    %v451 = vsel %vm203, %v449, 0
    %453 = vmatprep.subr.bf16.mxu0 0
    %454 = vmatpush1.bf16.msra.mxu0 0
    %455 = vmatprep.subr.bf16.mxu0 0
    %456 = vmatpush1.bf16.msra.mxu0 0
    %457 = vmatprep.subr.bf16.mxu0 0
    %458 = vmatpush1.bf16.msra.mxu0 0
    %459 = vmatprep.subr.bf16.mxu0 0
    %460 = vmatpush1.bf16.msra.mxu0 0
    %461 = vmatprep.subr.bf16.mxu0 0
    %462 = vmatpush1.bf16.msra.mxu0 0
    %463 = vmatprep.subr.bf16.mxu0 0
    %464 = vmatpush1.bf16.msra.mxu0 0
    %465 = vmatprep.subr.bf16.mxu0 0
    %466 = vmatpush1.bf16.msra.mxu0 %v200
    %467 = vmatprep.subr.bf16.mxu0 0
    %468 = vmatpush1.bf16.msra.mxu0 %v199
    %469 = vmatprep.subr.bf16.mxu0 0
    %470 = vmatpush2.bf16.msra.mxu0 0
    %471 = vmatprep.subr.bf16.mxu0 0
    %472 = vmatpush2.bf16.msra.mxu0 0
    %473 = vmatprep.subr.bf16.mxu0 0
    %474 = vmatpush2.bf16.msra.mxu0 0
    %475 = vmatprep.subr.bf16.mxu0 0
    %476 = vmatpush2.bf16.msra.mxu0 0
    %477 = vmatprep.subr.bf16.mxu0 0
    %478 = vmatpush2.bf16.msra.mxu0 0
    %479 = vmatprep.subr.bf16.mxu0 0
    %480 = vmatpush2.bf16.msra.mxu0 0
    %481 = vmatprep.subr.bf16.mxu0 0
    %482 = vmatpush2.bf16.msra.mxu0 0
    %483 = vmatprep.subr.bf16.mxu0 0
    %484 = vmatpush2.bf16.msra.mxu0 0
    %485 = vmatprep.mubr.bf16.mxu0 0
    %486 = vmatmul.mubr.bf16.gmra.mxu0 %v451
    %v487 = vpop.f32.mrf.mxu0
    %v488 = vadd.f32 0.0, %v487
    %v489 = vpop.f32.mrf.mxu0
    %v490 = vpop.f32.mrf.mxu0
    %v491 = vpop.f32.mrf.mxu0
    %492 = vdwg.mxu0
    %v493 = vadd.f32 %v169, %v488
    %v494 = vxor.u32 %v493, 2147483648
    %v495 = vmul.f32 %v494, 1.442695
    %v496 = vpow.pop %v495
    %v497 = vadd.f32 %v496, 1.0
    %v498 = vrcp.pop %v497
    %v499 = vmul.f32 1.0, %v498
    %v500 = vtanh.pop %v493
    %v501 = vmul.f32 %v499, %v337
    %503 = vrot.lane.b32.xlu0 %v500, 64
    %v504 = vpop.permute.xlu0 %503
    %v506 = vmul.f32 %v499, %v504
    %508 = vrot.lane.b32.xlu0 %v506, 32
    %v509 = vpop.permute.xlu0 %508
    %v511 = vadd.f32 %v501, %v509
    %v512 = vtanh.pop %v511
    %514 = vrot.lane.b32.xlu0 %v512, 64
    %v515 = vpop.permute.xlu0 %514
    %v517 = vmul.f32 %v499, %v515
    %519 = vrot.lane.b32.xlu0 %v343, 32
    %v520 = vpop.permute.xlu0 %519
    %523 = vrot.lane.b32.xlu0 %v445, 64
    %v524 = vpop.permute.xlu0 %523
    %v526 = vsel %vm203, %v520, %v524
    %v527 = vpack.c.bf16 %v526, %v526
    %v529 = vsel %vm378, %v527, 0
    %531 = vmatprep.subr.bf16.mxu0 0
    %532 = vmatpush1.bf16.msra.mxu0 0
    %533 = vmatprep.subr.bf16.mxu0 0
    %534 = vmatpush1.bf16.msra.mxu0 0
    %535 = vmatprep.subr.bf16.mxu0 0
    %536 = vmatpush1.bf16.msra.mxu0 0
    %537 = vmatprep.subr.bf16.mxu0 0
    %538 = vmatpush1.bf16.msra.mxu0 0
    %539 = vmatprep.subr.bf16.mxu0 0
    %540 = vmatpush1.bf16.msra.mxu0 %v373
    %541 = vmatprep.subr.bf16.mxu0 0
    %542 = vmatpush1.bf16.msra.mxu0 %v372
    %543 = vmatprep.subr.bf16.mxu0 0
    %544 = vmatpush1.bf16.msra.mxu0 %v371
    %545 = vmatprep.subr.bf16.mxu0 0
    %546 = vmatpush1.bf16.msra.mxu0 %v370
    %547 = vmatprep.subr.bf16.mxu0 0
    %548 = vmatpush2.bf16.msra.mxu0 0
    %549 = vmatprep.subr.bf16.mxu0 0
    %550 = vmatpush2.bf16.msra.mxu0 0
    %551 = vmatprep.subr.bf16.mxu0 0
    %552 = vmatpush2.bf16.msra.mxu0 0
    %553 = vmatprep.subr.bf16.mxu0 0
    %554 = vmatpush2.bf16.msra.mxu0 0
    %555 = vmatprep.subr.bf16.mxu0 0
    %556 = vmatpush2.bf16.msra.mxu0 0
    %557 = vmatprep.subr.bf16.mxu0 0
    %558 = vmatpush2.bf16.msra.mxu0 0
    %559 = vmatprep.subr.bf16.mxu0 0
    %560 = vmatpush2.bf16.msra.mxu0 0
    %561 = vmatprep.subr.bf16.mxu0 0
    %562 = vmatpush2.bf16.msra.mxu0 0
    %563 = vmatprep.mubr.bf16.mxu0 0
    %564 = vmatmul.mubr.bf16.gmra.mxu0 %v529
    %v565 = vpop.f32.mrf.mxu0
    %v566 = vadd.f32 %v353, %v565
    %v567 = vpop.f32.mrf.mxu0
    %v568 = vpop.f32.mrf.mxu0
    %v569 = vpop.f32.mrf.mxu0
    %570 = vdwg.mxu0
    %v571 = vxor.u32 %v566, 2147483648
    %v572 = vmul.f32 %v571, 1.442695
    %v573 = vpow.pop %v572
    %v574 = vadd.f32 %v573, 1.0
    %v575 = vrcp.pop %v574
    %v576 = vmul.f32 1.0, %v575
    %v577 = vtanh.pop %v566
    %v578 = vmul.f32 %v576, %v439
    %580 = vrot.lane.b32.xlu0 %v577, 64
    %v581 = vpop.permute.xlu0 %580
    %v583 = vmul.f32 %v576, %v581
    %585 = vrot.lane.b32.xlu0 %v583, 32
    %v586 = vpop.permute.xlu0 %585
    %v588 = vadd.f32 %v578, %v586
    %v589 = vtanh.pop %v588
    %591 = vrot.lane.b32.xlu0 %v589, 64
    %v592 = vpop.permute.xlu0 %591
    %v594 = vmul.f32 %v576, %v592
    %595 = vrot.lane.b32.xlu0 %v445, 32
    %v596 = vpop.permute.xlu0 %595
    %v598 = vsel %vm203, %v596, 0.0
    %v599 = vpack.c.bf16 %v598, %v598
    %v600 = vlaneseq
    %v601 = vshrl.u32 %v600, 7
    %v602 = vsub.s32 0, %v601
    %v603 = vrot.slane %v74, %v602
    %v612 = vunpack.c.l.b16 %v64
    %v613 = vunpack.c.l.b16 %v65
    %v614 = vunpack.c.l.b16 %v66
    %v615 = vunpack.c.l.b16 %v67
    %v616 = vunpack.c.l.b16 %v68
    %v617 = vunpack.c.l.b16 %v69
    %v618 = vunpack.c.l.b16 %v70
    %v619 = vunpack.c.l.b16 %v71
    %v620 = vpack.c.b16 %v613, %v612
    %v621 = vpack.c.b16 %v615, %v614
    %v622 = vpack.c.b16 %v617, %v616
    %v623 = vpack.c.b16 %v619, %v618
    %v629 = vsel %vm378, %v599, 0
    %631 = vmatprep.subr.bf16.mxu0 0
    %632 = vmatpush1.bf16.msra.mxu0 0
    %633 = vmatprep.subr.bf16.mxu0 0
    %634 = vmatpush1.bf16.msra.mxu0 0
    %635 = vmatprep.subr.bf16.mxu0 0
    %636 = vmatpush1.bf16.msra.mxu0 0
    %637 = vmatprep.subr.bf16.mxu0 0
    %638 = vmatpush1.bf16.msra.mxu0 0
    %639 = vmatprep.subr.bf16.mxu0 0
    %640 = vmatpush1.bf16.msra.mxu0 %v623
    %641 = vmatprep.subr.bf16.mxu0 0
    %642 = vmatpush1.bf16.msra.mxu0 %v622
    %643 = vmatprep.subr.bf16.mxu0 0
    %644 = vmatpush1.bf16.msra.mxu0 %v621
    %645 = vmatprep.subr.bf16.mxu0 0
    %646 = vmatpush1.bf16.msra.mxu0 %v620
    %647 = vmatprep.subr.bf16.mxu0 0
    %648 = vmatpush2.bf16.msra.mxu0 0
    %649 = vmatprep.subr.bf16.mxu0 0
    %650 = vmatpush2.bf16.msra.mxu0 0
    %651 = vmatprep.subr.bf16.mxu0 0
    %652 = vmatpush2.bf16.msra.mxu0 0
    %653 = vmatprep.subr.bf16.mxu0 0
    %654 = vmatpush2.bf16.msra.mxu0 0
    %655 = vmatprep.subr.bf16.mxu0 0
    %656 = vmatpush2.bf16.msra.mxu0 0
    %657 = vmatprep.subr.bf16.mxu0 0
    %658 = vmatpush2.bf16.msra.mxu0 0
    %659 = vmatprep.subr.bf16.mxu0 0
    %660 = vmatpush2.bf16.msra.mxu0 0
    %661 = vmatprep.subr.bf16.mxu0 0
    %662 = vmatpush2.bf16.msra.mxu0 0
    %663 = vmatprep.mubr.bf16.mxu0 0
    %664 = vmatmul.mubr.bf16.gmra.mxu0 %v629
    %v665 = vpop.f32.mrf.mxu0
    %v666 = vadd.f32 %v603, %v665
    %v667 = vpop.f32.mrf.mxu0
    %v668 = vpop.f32.mrf.mxu0
    %v669 = vpop.f32.mrf.mxu0
    %670 = vdwg.mxu0
    %v671 = vxor.u32 %v666, 2147483648
    %v672 = vmul.f32 %v671, 1.442695
    %v673 = vpow.pop %v672
    %v674 = vadd.f32 %v673, 1.0
    %v675 = vrcp.pop %v674
    %v676 = vmul.f32 1.0, %v675
    %v677 = vtanh.pop %v666
    %v678 = vmul.f32 %v676, 0.0
    %680 = vrot.lane.b32.xlu0 %v677, 64
    %v681 = vpop.permute.xlu0 %680
    %v683 = vmul.f32 %v676, %v681
    %685 = vrot.lane.b32.xlu0 %v683, 32
    %v686 = vpop.permute.xlu0 %685
    %v688 = vadd.f32 %v678, %v686
    %v689 = vtanh.pop %v688
    %691 = vrot.lane.b32.xlu0 %v689, 64
    %v692 = vpop.permute.xlu0 %691
    %v694 = vmul.f32 %v676, %v692
    %v695 = vpack.c.bf16 %v517, %v517
    %697 = vrot.lane.b32.xlu0 %v695, 32
    %v698 = vpop.permute.xlu0 %697
    %v700 = vsel %vm203, %v698, 0
    %702 = vmatprep.subr.bf16.mxu0 0
    %703 = vmatpush1.bf16.msra.mxu0 0
    %704 = vmatprep.subr.bf16.mxu0 0
    %705 = vmatpush1.bf16.msra.mxu0 0
    %706 = vmatprep.subr.bf16.mxu0 0
    %707 = vmatpush1.bf16.msra.mxu0 0
    %708 = vmatprep.subr.bf16.mxu0 0
    %709 = vmatpush1.bf16.msra.mxu0 0
    %710 = vmatprep.subr.bf16.mxu0 0
    %711 = vmatpush1.bf16.msra.mxu0 0
    %712 = vmatprep.subr.bf16.mxu0 0
    %713 = vmatpush1.bf16.msra.mxu0 0
    %714 = vmatprep.subr.bf16.mxu0 0
    %715 = vmatpush1.bf16.msra.mxu0 %v200
    %716 = vmatprep.subr.bf16.mxu0 0
    %717 = vmatpush1.bf16.msra.mxu0 %v199
    %718 = vmatprep.subr.bf16.mxu0 0
    %719 = vmatpush2.bf16.msra.mxu0 0
    %720 = vmatprep.subr.bf16.mxu0 0
    %721 = vmatpush2.bf16.msra.mxu0 0
    %722 = vmatprep.subr.bf16.mxu0 0
    %723 = vmatpush2.bf16.msra.mxu0 0
    %724 = vmatprep.subr.bf16.mxu0 0
    %725 = vmatpush2.bf16.msra.mxu0 0
    %726 = vmatprep.subr.bf16.mxu0 0
    %727 = vmatpush2.bf16.msra.mxu0 0
    %728 = vmatprep.subr.bf16.mxu0 0
    %729 = vmatpush2.bf16.msra.mxu0 0
    %730 = vmatprep.subr.bf16.mxu0 0
    %731 = vmatpush2.bf16.msra.mxu0 0
    %732 = vmatprep.subr.bf16.mxu0 0
    %733 = vmatpush2.bf16.msra.mxu0 0
    %734 = vmatprep.mubr.bf16.mxu0 0
    %735 = vmatmul.mubr.bf16.gmra.mxu0 %v700
    %v736 = vpop.f32.mrf.mxu0
    %v737 = vadd.f32 0.0, %v736
    %v738 = vpop.f32.mrf.mxu0
    %v739 = vpop.f32.mrf.mxu0
    %v740 = vpop.f32.mrf.mxu0
    %741 = vdwg.mxu0
    %v742 = vadd.f32 %v172, %v737
    %v743 = vxor.u32 %v742, 2147483648
    %v744 = vmul.f32 %v743, 1.442695
    %v745 = vpow.pop %v744
    %v746 = vadd.f32 %v745, 1.0
    %v747 = vrcp.pop %v746
    %v748 = vmul.f32 1.0, %v747
    %v749 = vtanh.pop %v742
    %v750 = vmul.f32 %v748, %v511
    %752 = vrot.lane.b32.xlu0 %v749, 64
    %v753 = vpop.permute.xlu0 %752
    %v755 = vmul.f32 %v748, %v753
    %757 = vrot.lane.b32.xlu0 %v755, 32
    %v758 = vpop.permute.xlu0 %757
    %v760 = vadd.f32 %v750, %v758
    %v761 = vtanh.pop %v760
    %763 = vrot.lane.b32.xlu0 %v761, 64
    %v764 = vpop.permute.xlu0 %763
    %v766 = vmul.f32 %v748, %v764
    %768 = vrot.lane.b32.xlu0 %v517, 32
    %v769 = vpop.permute.xlu0 %768
    %772 = vrot.lane.b32.xlu0 %v594, 64
    %v773 = vpop.permute.xlu0 %772
    %v775 = vsel %vm203, %v769, %v773
    %v776 = vpack.c.bf16 %v775, %v775
    %v778 = vsel %vm378, %v776, 0
    %780 = vmatprep.subr.bf16.mxu0 0
    %781 = vmatpush1.bf16.msra.mxu0 0
    %782 = vmatprep.subr.bf16.mxu0 0
    %783 = vmatpush1.bf16.msra.mxu0 0
    %784 = vmatprep.subr.bf16.mxu0 0
    %785 = vmatpush1.bf16.msra.mxu0 0
    %786 = vmatprep.subr.bf16.mxu0 0
    %787 = vmatpush1.bf16.msra.mxu0 0
    %788 = vmatprep.subr.bf16.mxu0 0
    %789 = vmatpush1.bf16.msra.mxu0 %v373
    %790 = vmatprep.subr.bf16.mxu0 0
    %791 = vmatpush1.bf16.msra.mxu0 %v372
    %792 = vmatprep.subr.bf16.mxu0 0
    %793 = vmatpush1.bf16.msra.mxu0 %v371
    %794 = vmatprep.subr.bf16.mxu0 0
    %795 = vmatpush1.bf16.msra.mxu0 %v370
    %796 = vmatprep.subr.bf16.mxu0 0
    %797 = vmatpush2.bf16.msra.mxu0 0
    %798 = vmatprep.subr.bf16.mxu0 0
    %799 = vmatpush2.bf16.msra.mxu0 0
    %800 = vmatprep.subr.bf16.mxu0 0
    %801 = vmatpush2.bf16.msra.mxu0 0
    %802 = vmatprep.subr.bf16.mxu0 0
    %803 = vmatpush2.bf16.msra.mxu0 0
    %804 = vmatprep.subr.bf16.mxu0 0
    %805 = vmatpush2.bf16.msra.mxu0 0
    %806 = vmatprep.subr.bf16.mxu0 0
    %807 = vmatpush2.bf16.msra.mxu0 0
    %808 = vmatprep.subr.bf16.mxu0 0
    %809 = vmatpush2.bf16.msra.mxu0 0
    %810 = vmatprep.subr.bf16.mxu0 0
    %811 = vmatpush2.bf16.msra.mxu0 0
    %812 = vmatprep.mubr.bf16.mxu0 0
    %813 = vmatmul.mubr.bf16.gmra.mxu0 %v778
    %v814 = vpop.f32.mrf.mxu0
    %v815 = vadd.f32 %v353, %v814
    %v816 = vpop.f32.mrf.mxu0
    %v817 = vpop.f32.mrf.mxu0
    %v818 = vpop.f32.mrf.mxu0
    %819 = vdwg.mxu0
    %v820 = vxor.u32 %v815, 2147483648
    %v821 = vmul.f32 %v820, 1.442695
    %v822 = vpow.pop %v821
    %v823 = vadd.f32 %v822, 1.0
    %v824 = vrcp.pop %v823
    %v825 = vmul.f32 1.0, %v824
    %v826 = vtanh.pop %v815
    %v827 = vmul.f32 %v825, %v588
    %829 = vrot.lane.b32.xlu0 %v826, 64
    %v830 = vpop.permute.xlu0 %829
    %v832 = vmul.f32 %v825, %v830
    %834 = vrot.lane.b32.xlu0 %v832, 32
    %v835 = vpop.permute.xlu0 %834
    %v837 = vadd.f32 %v827, %v835
    %v838 = vtanh.pop %v837
    %840 = vrot.lane.b32.xlu0 %v838, 64
    %v841 = vpop.permute.xlu0 %840
    %v843 = vmul.f32 %v825, %v841
    %844 = vrot.lane.b32.xlu0 %v594, 32
    %v845 = vpop.permute.xlu0 %844
    %848 = vrot.lane.b32.xlu0 %v694, 64
    %v849 = vpop.permute.xlu0 %848
    %v851 = vsel %vm203, %v845, %v849
    %v852 = vpack.c.bf16 %v851, %v851
    %v854 = vsel %vm378, %v852, 0
    %856 = vmatprep.subr.bf16.mxu0 0
    %857 = vmatpush1.bf16.msra.mxu0 0
    %858 = vmatprep.subr.bf16.mxu0 0
    %859 = vmatpush1.bf16.msra.mxu0 0
    %860 = vmatprep.subr.bf16.mxu0 0
    %861 = vmatpush1.bf16.msra.mxu0 0
    %862 = vmatprep.subr.bf16.mxu0 0
    %863 = vmatpush1.bf16.msra.mxu0 0
    %864 = vmatprep.subr.bf16.mxu0 0
    %865 = vmatpush1.bf16.msra.mxu0 %v623
    %866 = vmatprep.subr.bf16.mxu0 0
    %867 = vmatpush1.bf16.msra.mxu0 %v622
    %868 = vmatprep.subr.bf16.mxu0 0
    %869 = vmatpush1.bf16.msra.mxu0 %v621
    %870 = vmatprep.subr.bf16.mxu0 0
    %871 = vmatpush1.bf16.msra.mxu0 %v620
    %872 = vmatprep.subr.bf16.mxu0 0
    %873 = vmatpush2.bf16.msra.mxu0 0
    %874 = vmatprep.subr.bf16.mxu0 0
    %875 = vmatpush2.bf16.msra.mxu0 0
    %876 = vmatprep.subr.bf16.mxu0 0
    %877 = vmatpush2.bf16.msra.mxu0 0
    %878 = vmatprep.subr.bf16.mxu0 0
    %879 = vmatpush2.bf16.msra.mxu0 0
    %880 = vmatprep.subr.bf16.mxu0 0
    %881 = vmatpush2.bf16.msra.mxu0 0
    %882 = vmatprep.subr.bf16.mxu0 0
    %883 = vmatpush2.bf16.msra.mxu0 0
    %884 = vmatprep.subr.bf16.mxu0 0
    %885 = vmatpush2.bf16.msra.mxu0 0
    %886 = vmatprep.subr.bf16.mxu0 0
    %887 = vmatpush2.bf16.msra.mxu0 0
    %888 = vmatprep.mubr.bf16.mxu0 0
    %889 = vmatmul.mubr.bf16.gmra.mxu0 %v854
    %v890 = vpop.f32.mrf.mxu0
    %v891 = vadd.f32 %v603, %v890
    %v892 = vpop.f32.mrf.mxu0
    %v893 = vpop.f32.mrf.mxu0
    %v894 = vpop.f32.mrf.mxu0
    %895 = vdwg.mxu0
    %v896 = vxor.u32 %v891, 2147483648
    %v897 = vmul.f32 %v896, 1.442695
    %v898 = vpow.pop %v897
    %v899 = vadd.f32 %v898, 1.0
    %v900 = vrcp.pop %v899
    %v901 = vmul.f32 1.0, %v900
    %v902 = vtanh.pop %v891
    %v903 = vmul.f32 %v901, %v688
    %905 = vrot.lane.b32.xlu0 %v902, 64
    %v906 = vpop.permute.xlu0 %905
    %v908 = vmul.f32 %v901, %v906
    %910 = vrot.lane.b32.xlu0 %v908, 32
    %v911 = vpop.permute.xlu0 %910
    %v913 = vadd.f32 %v903, %v911
    %v914 = vtanh.pop %v913
    %916 = vrot.lane.b32.xlu0 %v914, 64
    %v917 = vpop.permute.xlu0 %916
    %v919 = vmul.f32 %v901, %v917
    %v920 = vpack.c.bf16 %v766, %v766
    %922 = vrot.lane.b32.xlu0 %v920, 32
    %v923 = vpop.permute.xlu0 %922
    %v925 = vsel %vm203, %v923, 0
    %927 = vmatprep.subr.bf16.mxu0 0
    %928 = vmatpush1.bf16.msra.mxu0 0
    %929 = vmatprep.subr.bf16.mxu0 0
    %930 = vmatpush1.bf16.msra.mxu0 0
    %931 = vmatprep.subr.bf16.mxu0 0
    %932 = vmatpush1.bf16.msra.mxu0 0
    %933 = vmatprep.subr.bf16.mxu0 0
    %934 = vmatpush1.bf16.msra.mxu0 0
    %935 = vmatprep.subr.bf16.mxu0 0
    %936 = vmatpush1.bf16.msra.mxu0 0
    %937 = vmatprep.subr.bf16.mxu0 0
    %938 = vmatpush1.bf16.msra.mxu0 0
    %939 = vmatprep.subr.bf16.mxu0 0
    %940 = vmatpush1.bf16.msra.mxu0 %v200
    %941 = vmatprep.subr.bf16.mxu0 0
    %942 = vmatpush1.bf16.msra.mxu0 %v199
    %943 = vmatprep.subr.bf16.mxu0 0
    %944 = vmatpush2.bf16.msra.mxu0 0
    %945 = vmatprep.subr.bf16.mxu0 0
    %946 = vmatpush2.bf16.msra.mxu0 0
    %947 = vmatprep.subr.bf16.mxu0 0
    %948 = vmatpush2.bf16.msra.mxu0 0
    %949 = vmatprep.subr.bf16.mxu0 0
    %950 = vmatpush2.bf16.msra.mxu0 0
    %951 = vmatprep.subr.bf16.mxu0 0
    %952 = vmatpush2.bf16.msra.mxu0 0
    %953 = vmatprep.subr.bf16.mxu0 0
    %954 = vmatpush2.bf16.msra.mxu0 0
    %955 = vmatprep.subr.bf16.mxu0 0
    %956 = vmatpush2.bf16.msra.mxu0 0
    %957 = vmatprep.subr.bf16.mxu0 0
    %958 = vmatpush2.bf16.msra.mxu0 0
    %959 = vmatprep.mubr.bf16.mxu0 0
    %960 = vmatmul.mubr.bf16.gmra.mxu0 %v925
    %v961 = vpop.f32.mrf.mxu0
    %v962 = vadd.f32 0.0, %v961
    %v963 = vpop.f32.mrf.mxu0
    %v964 = vpop.f32.mrf.mxu0
    %v965 = vpop.f32.mrf.mxu0
    %966 = vdwg.mxu0
    %v967 = vadd.f32 %v177, %v962
    %v968 = vxor.u32 %v967, 2147483648
    %v969 = vmul.f32 %v968, 1.442695
    %v970 = vpow.pop %v969
    %v971 = vadd.f32 %v970, 1.0
    %v972 = vrcp.pop %v971
    %v973 = vmul.f32 1.0, %v972
    %v974 = vtanh.pop %v967
    %v975 = vmul.f32 %v973, %v760
    %977 = vrot.lane.b32.xlu0 %v974, 64
    %v978 = vpop.permute.xlu0 %977
    %v980 = vmul.f32 %v973, %v978
    %982 = vrot.lane.b32.xlu0 %v980, 32
    %v983 = vpop.permute.xlu0 %982
    %v985 = vadd.f32 %v975, %v983
    %v986 = vtanh.pop %v985
    %988 = vrot.lane.b32.xlu0 %v986, 64
    %v989 = vpop.permute.xlu0 %988
    %v991 = vmul.f32 %v973, %v989
    %993 = vrot.lane.b32.xlu0 %v766, 32
    %v994 = vpop.permute.xlu0 %993
    %997 = vrot.lane.b32.xlu0 %v843, 64
    %v998 = vpop.permute.xlu0 %997
    %v1000 = vsel %vm203, %v994, %v998
    %v1001 = vpack.c.bf16 %v1000, %v1000
    %v1003 = vsel %vm378, %v1001, 0
    %1005 = vmatprep.subr.bf16.mxu0 0
    %1006 = vmatpush1.bf16.msra.mxu0 0
    %1007 = vmatprep.subr.bf16.mxu0 0
    %1008 = vmatpush1.bf16.msra.mxu0 0
    %1009 = vmatprep.subr.bf16.mxu0 0
    %1010 = vmatpush1.bf16.msra.mxu0 0
    %1011 = vmatprep.subr.bf16.mxu0 0
    %1012 = vmatpush1.bf16.msra.mxu0 0
    %1013 = vmatprep.subr.bf16.mxu0 0
    %1014 = vmatpush1.bf16.msra.mxu0 %v373
    %1015 = vmatprep.subr.bf16.mxu0 0
    %1016 = vmatpush1.bf16.msra.mxu0 %v372
    %1017 = vmatprep.subr.bf16.mxu0 0
    %1018 = vmatpush1.bf16.msra.mxu0 %v371
    %1019 = vmatprep.subr.bf16.mxu0 0
    %1020 = vmatpush1.bf16.msra.mxu0 %v370
    %1021 = vmatprep.subr.bf16.mxu0 0
    %1022 = vmatpush2.bf16.msra.mxu0 0
    %1023 = vmatprep.subr.bf16.mxu0 0
    %1024 = vmatpush2.bf16.msra.mxu0 0
    %1025 = vmatprep.subr.bf16.mxu0 0
    %1026 = vmatpush2.bf16.msra.mxu0 0
    %1027 = vmatprep.subr.bf16.mxu0 0
    %1028 = vmatpush2.bf16.msra.mxu0 0
    %1029 = vmatprep.subr.bf16.mxu0 0
    %1030 = vmatpush2.bf16.msra.mxu0 0
    %1031 = vmatprep.subr.bf16.mxu0 0
    %1032 = vmatpush2.bf16.msra.mxu0 0
    %1033 = vmatprep.subr.bf16.mxu0 0
    %1034 = vmatpush2.bf16.msra.mxu0 0
    %1035 = vmatprep.subr.bf16.mxu0 0
    %1036 = vmatpush2.bf16.msra.mxu0 0
    %1037 = vmatprep.mubr.bf16.mxu0 0
    %1038 = vmatmul.mubr.bf16.gmra.mxu0 %v1003
    %v1039 = vpop.f32.mrf.mxu0
    %v1040 = vadd.f32 %v353, %v1039
    %v1041 = vpop.f32.mrf.mxu0
    %v1042 = vpop.f32.mrf.mxu0
    %v1043 = vpop.f32.mrf.mxu0
    %1044 = vdwg.mxu0
    %v1045 = vxor.u32 %v1040, 2147483648
    %v1046 = vmul.f32 %v1045, 1.442695
    %v1047 = vpow.pop %v1046
    %v1048 = vadd.f32 %v1047, 1.0
    %v1049 = vrcp.pop %v1048
    %v1050 = vmul.f32 1.0, %v1049
    %v1051 = vtanh.pop %v1040
    %v1052 = vmul.f32 %v1050, %v837
    %1054 = vrot.lane.b32.xlu0 %v1051, 64
    %v1055 = vpop.permute.xlu0 %1054
    %v1057 = vmul.f32 %v1050, %v1055
    %1059 = vrot.lane.b32.xlu0 %v1057, 32
    %v1060 = vpop.permute.xlu0 %1059
    %v1062 = vadd.f32 %v1052, %v1060
    %v1063 = vtanh.pop %v1062
    %1065 = vrot.lane.b32.xlu0 %v1063, 64
    %v1066 = vpop.permute.xlu0 %1065
    %v1068 = vmul.f32 %v1050, %v1066
    %1069 = vrot.lane.b32.xlu0 %v843, 32
    %v1070 = vpop.permute.xlu0 %1069
    %1073 = vrot.lane.b32.xlu0 %v919, 64
    %v1074 = vpop.permute.xlu0 %1073
    %v1076 = vsel %vm203, %v1070, %v1074
    %v1077 = vpack.c.bf16 %v1076, %v1076
    %v1079 = vsel %vm378, %v1077, 0
    %1081 = vmatprep.subr.bf16.mxu0 0
    %1082 = vmatpush1.bf16.msra.mxu0 0
    %1083 = vmatprep.subr.bf16.mxu0 0
    %1084 = vmatpush1.bf16.msra.mxu0 0
    %1085 = vmatprep.subr.bf16.mxu0 0
    %1086 = vmatpush1.bf16.msra.mxu0 0
    %1087 = vmatprep.subr.bf16.mxu0 0
    %1088 = vmatpush1.bf16.msra.mxu0 0
    %1089 = vmatprep.subr.bf16.mxu0 0
    %1090 = vmatpush1.bf16.msra.mxu0 %v623
    %1091 = vmatprep.subr.bf16.mxu0 0
    %1092 = vmatpush1.bf16.msra.mxu0 %v622
    %1093 = vmatprep.subr.bf16.mxu0 0
    %1094 = vmatpush1.bf16.msra.mxu0 %v621
    %1095 = vmatprep.subr.bf16.mxu0 0
    %1096 = vmatpush1.bf16.msra.mxu0 %v620
    %1097 = vmatprep.subr.bf16.mxu0 0
    %1098 = vmatpush2.bf16.msra.mxu0 0
    %1099 = vmatprep.subr.bf16.mxu0 0
    %1100 = vmatpush2.bf16.msra.mxu0 0
    %1101 = vmatprep.subr.bf16.mxu0 0
    %1102 = vmatpush2.bf16.msra.mxu0 0
    %1103 = vmatprep.subr.bf16.mxu0 0
    %1104 = vmatpush2.bf16.msra.mxu0 0
    %1105 = vmatprep.subr.bf16.mxu0 0
    %1106 = vmatpush2.bf16.msra.mxu0 0
    %1107 = vmatprep.subr.bf16.mxu0 0
    %1108 = vmatpush2.bf16.msra.mxu0 0
    %1109 = vmatprep.subr.bf16.mxu0 0
    %1110 = vmatpush2.bf16.msra.mxu0 0
    %1111 = vmatprep.subr.bf16.mxu0 0
    %1112 = vmatpush2.bf16.msra.mxu0 0
    %1113 = vmatprep.mubr.bf16.mxu0 0
    %1114 = vmatmul.mubr.bf16.gmra.mxu0 %v1079
    %v1115 = vpop.f32.mrf.mxu0
    %v1116 = vadd.f32 %v603, %v1115
    %v1117 = vpop.f32.mrf.mxu0
    %v1118 = vpop.f32.mrf.mxu0
    %v1119 = vpop.f32.mrf.mxu0
    %1120 = vdwg.mxu0
    %v1121 = vxor.u32 %v1116, 2147483648
    %v1122 = vmul.f32 %v1121, 1.442695
    %v1123 = vpow.pop %v1122
    %v1124 = vadd.f32 %v1123, 1.0
    %v1125 = vrcp.pop %v1124
    %v1126 = vmul.f32 1.0, %v1125
    %v1127 = vtanh.pop %v1116
    %v1128 = vmul.f32 %v1126, %v913
    %1130 = vrot.lane.b32.xlu0 %v1127, 64
    %v1131 = vpop.permute.xlu0 %1130
    %v1133 = vmul.f32 %v1126, %v1131
    %1135 = vrot.lane.b32.xlu0 %v1133, 32
    %v1136 = vpop.permute.xlu0 %1135
    %v1138 = vadd.f32 %v1128, %v1136
    %v1139 = vtanh.pop %v1138
    %1141 = vrot.lane.b32.xlu0 %v1139, 64
    %v1142 = vpop.permute.xlu0 %1141
    %v1144 = vmul.f32 %v1126, %v1142
    %v1145 = vpack.c.bf16 %v991, %v991
    %1147 = vrot.lane.b32.xlu0 %v1145, 32
    %v1148 = vpop.permute.xlu0 %1147
    %v1150 = vsel %vm203, %v1148, 0
    %1152 = vmatprep.subr.bf16.mxu0 0
    %1153 = vmatpush1.bf16.msra.mxu0 0
    %1154 = vmatprep.subr.bf16.mxu0 0
    %1155 = vmatpush1.bf16.msra.mxu0 0
    %1156 = vmatprep.subr.bf16.mxu0 0
    %1157 = vmatpush1.bf16.msra.mxu0 0
    %1158 = vmatprep.subr.bf16.mxu0 0
    %1159 = vmatpush1.bf16.msra.mxu0 0
    %1160 = vmatprep.subr.bf16.mxu0 0
    %1161 = vmatpush1.bf16.msra.mxu0 0
    %1162 = vmatprep.subr.bf16.mxu0 0
    %1163 = vmatpush1.bf16.msra.mxu0 0
    %1164 = vmatprep.subr.bf16.mxu0 0
    %1165 = vmatpush1.bf16.msra.mxu0 %v200
    %1166 = vmatprep.subr.bf16.mxu0 0
    %1167 = vmatpush1.bf16.msra.mxu0 %v199
    %1168 = vmatprep.subr.bf16.mxu0 0
    %1169 = vmatpush2.bf16.msra.mxu0 0
    %1170 = vmatprep.subr.bf16.mxu0 0
    %1171 = vmatpush2.bf16.msra.mxu0 0
    %1172 = vmatprep.subr.bf16.mxu0 0
    %1173 = vmatpush2.bf16.msra.mxu0 0
    %1174 = vmatprep.subr.bf16.mxu0 0
    %1175 = vmatpush2.bf16.msra.mxu0 0
    %1176 = vmatprep.subr.bf16.mxu0 0
    %1177 = vmatpush2.bf16.msra.mxu0 0
    %1178 = vmatprep.subr.bf16.mxu0 0
    %1179 = vmatpush2.bf16.msra.mxu0 0
    %1180 = vmatprep.subr.bf16.mxu0 0
    %1181 = vmatpush2.bf16.msra.mxu0 0
    %1182 = vmatprep.subr.bf16.mxu0 0
    %1183 = vmatpush2.bf16.msra.mxu0 0
    %1184 = vmatprep.mubr.bf16.mxu0 0
    %1185 = vmatmul.mubr.bf16.gmra.mxu0 %v1150
    %v1186 = vpop.f32.mrf.mxu0
    %v1187 = vadd.f32 0.0, %v1186
    %v1188 = vpop.f32.mrf.mxu0
    %v1189 = vpop.f32.mrf.mxu0
    %v1190 = vpop.f32.mrf.mxu0
    %1191 = vdwg.mxu0
    %v1192 = vadd.f32 %v180, %v1187
    %v1193 = vxor.u32 %v1192, 2147483648
    %v1194 = vmul.f32 %v1193, 1.442695
    %v1195 = vpow.pop %v1194
    %v1196 = vadd.f32 %v1195, 1.0
    %v1197 = vrcp.pop %v1196
    %v1198 = vmul.f32 1.0, %v1197
    %v1199 = vtanh.pop %v1192
    %v1200 = vmul.f32 %v1198, %v985
    %1202 = vrot.lane.b32.xlu0 %v1199, 64
    %v1203 = vpop.permute.xlu0 %1202
    %v1205 = vmul.f32 %v1198, %v1203
    %1207 = vrot.lane.b32.xlu0 %v1205, 32
    %v1208 = vpop.permute.xlu0 %1207
    %v1210 = vadd.f32 %v1200, %v1208
    %v1211 = vtanh.pop %v1210
    %1213 = vrot.lane.b32.xlu0 %v1211, 64
    %v1214 = vpop.permute.xlu0 %1213
    %v1216 = vmul.f32 %v1198, %v1214
    %1218 = vrot.lane.b32.xlu0 %v991, 32
    %v1219 = vpop.permute.xlu0 %1218
    %1222 = vrot.lane.b32.xlu0 %v1068, 64
    %v1223 = vpop.permute.xlu0 %1222
    %v1225 = vsel %vm203, %v1219, %v1223
    %v1226 = vpack.c.bf16 %v1225, %v1225
    %v1228 = vsel %vm378, %v1226, 0
    %1230 = vmatprep.subr.bf16.mxu0 0
    %1231 = vmatpush1.bf16.msra.mxu0 0
    %1232 = vmatprep.subr.bf16.mxu0 0
    %1233 = vmatpush1.bf16.msra.mxu0 0
    %1234 = vmatprep.subr.bf16.mxu0 0
    %1235 = vmatpush1.bf16.msra.mxu0 0
    %1236 = vmatprep.subr.bf16.mxu0 0
    %1237 = vmatpush1.bf16.msra.mxu0 0
    %1238 = vmatprep.subr.bf16.mxu0 0
    %1239 = vmatpush1.bf16.msra.mxu0 %v373
    %1240 = vmatprep.subr.bf16.mxu0 0
    %1241 = vmatpush1.bf16.msra.mxu0 %v372
    %1242 = vmatprep.subr.bf16.mxu0 0
    %1243 = vmatpush1.bf16.msra.mxu0 %v371
    %1244 = vmatprep.subr.bf16.mxu0 0
    %1245 = vmatpush1.bf16.msra.mxu0 %v370
    %1246 = vmatprep.subr.bf16.mxu0 0
    %1247 = vmatpush2.bf16.msra.mxu0 0
    %1248 = vmatprep.subr.bf16.mxu0 0
    %1249 = vmatpush2.bf16.msra.mxu0 0
    %1250 = vmatprep.subr.bf16.mxu0 0
    %1251 = vmatpush2.bf16.msra.mxu0 0
    %1252 = vmatprep.subr.bf16.mxu0 0
    %1253 = vmatpush2.bf16.msra.mxu0 0
    %1254 = vmatprep.subr.bf16.mxu0 0
    %1255 = vmatpush2.bf16.msra.mxu0 0
    %1256 = vmatprep.subr.bf16.mxu0 0
    %1257 = vmatpush2.bf16.msra.mxu0 0
    %1258 = vmatprep.subr.bf16.mxu0 0
    %1259 = vmatpush2.bf16.msra.mxu0 0
    %1260 = vmatprep.subr.bf16.mxu0 0
    %1261 = vmatpush2.bf16.msra.mxu0 0
    %1262 = vmatprep.mubr.bf16.mxu0 0
    %1263 = vmatmul.mubr.bf16.gmra.mxu0 %v1228
    %v1264 = vpop.f32.mrf.mxu0
    %v1265 = vadd.f32 %v353, %v1264
    %v1266 = vpop.f32.mrf.mxu0
    %v1267 = vpop.f32.mrf.mxu0
    %v1268 = vpop.f32.mrf.mxu0
    %1269 = vdwg.mxu0
    %v1270 = vxor.u32 %v1265, 2147483648
    %v1271 = vmul.f32 %v1270, 1.442695
    %v1272 = vpow.pop %v1271
    %v1273 = vadd.f32 %v1272, 1.0
    %v1274 = vrcp.pop %v1273
    %v1275 = vmul.f32 1.0, %v1274
    %v1276 = vtanh.pop %v1265
    %v1277 = vmul.f32 %v1275, %v1062
    %1279 = vrot.lane.b32.xlu0 %v1276, 64
    %v1280 = vpop.permute.xlu0 %1279
    %v1282 = vmul.f32 %v1275, %v1280
    %1284 = vrot.lane.b32.xlu0 %v1282, 32
    %v1285 = vpop.permute.xlu0 %1284
    %v1287 = vadd.f32 %v1277, %v1285
    %v1288 = vtanh.pop %v1287
    %1290 = vrot.lane.b32.xlu0 %v1288, 64
    %v1291 = vpop.permute.xlu0 %1290
    %v1293 = vmul.f32 %v1275, %v1291
    %1294 = vrot.lane.b32.xlu0 %v1068, 32
    %v1295 = vpop.permute.xlu0 %1294
    %1298 = vrot.lane.b32.xlu0 %v1144, 64
    %v1299 = vpop.permute.xlu0 %1298
    %v1301 = vsel %vm203, %v1295, %v1299
    %v1302 = vpack.c.bf16 %v1301, %v1301
    %v1304 = vsel %vm378, %v1302, 0
    %1306 = vmatprep.subr.bf16.mxu0 0
    %1307 = vmatpush1.bf16.msra.mxu0 0
    %1308 = vmatprep.subr.bf16.mxu0 0
    %1309 = vmatpush1.bf16.msra.mxu0 0
    %1310 = vmatprep.subr.bf16.mxu0 0
    %1311 = vmatpush1.bf16.msra.mxu0 0
    %1312 = vmatprep.subr.bf16.mxu0 0
    %1313 = vmatpush1.bf16.msra.mxu0 0
    %1314 = vmatprep.subr.bf16.mxu0 0
    %1315 = vmatpush1.bf16.msra.mxu0 %v623
    %1316 = vmatprep.subr.bf16.mxu0 0
    %1317 = vmatpush1.bf16.msra.mxu0 %v622
    %1318 = vmatprep.subr.bf16.mxu0 0
    %1319 = vmatpush1.bf16.msra.mxu0 %v621
    %1320 = vmatprep.subr.bf16.mxu0 0
    %1321 = vmatpush1.bf16.msra.mxu0 %v620
    %1322 = vmatprep.subr.bf16.mxu0 0
    %1323 = vmatpush2.bf16.msra.mxu0 0
    %1324 = vmatprep.subr.bf16.mxu0 0
    %1325 = vmatpush2.bf16.msra.mxu0 0
    %1326 = vmatprep.subr.bf16.mxu0 0
    %1327 = vmatpush2.bf16.msra.mxu0 0
    %1328 = vmatprep.subr.bf16.mxu0 0
    %1329 = vmatpush2.bf16.msra.mxu0 0
    %1330 = vmatprep.subr.bf16.mxu0 0
    %1331 = vmatpush2.bf16.msra.mxu0 0
    %1332 = vmatprep.subr.bf16.mxu0 0
    %1333 = vmatpush2.bf16.msra.mxu0 0
    %1334 = vmatprep.subr.bf16.mxu0 0
    %1335 = vmatpush2.bf16.msra.mxu0 0
    %1336 = vmatprep.subr.bf16.mxu0 0
    %1337 = vmatpush2.bf16.msra.mxu0 0
    %1338 = vmatprep.mubr.bf16.mxu0 0
    %1339 = vmatmul.mubr.bf16.gmra.mxu0 %v1304
    %v1340 = vpop.f32.mrf.mxu0
    %v1341 = vadd.f32 %v603, %v1340
    %v1342 = vpop.f32.mrf.mxu0
    %v1343 = vpop.f32.mrf.mxu0
    %v1344 = vpop.f32.mrf.mxu0
    %1345 = vdwg.mxu0
    %v1346 = vxor.u32 %v1341, 2147483648
    %v1347 = vmul.f32 %v1346, 1.442695
    %v1348 = vpow.pop %v1347
    %v1349 = vadd.f32 %v1348, 1.0
    %v1350 = vrcp.pop %v1349
    %v1351 = vmul.f32 1.0, %v1350
    %v1352 = vtanh.pop %v1341
    %v1353 = vmul.f32 %v1351, %v1138
    %1355 = vrot.lane.b32.xlu0 %v1352, 64
    %v1356 = vpop.permute.xlu0 %1355
    %v1358 = vmul.f32 %v1351, %v1356
    %1360 = vrot.lane.b32.xlu0 %v1358, 32
    %v1361 = vpop.permute.xlu0 %1360
    %v1363 = vadd.f32 %v1353, %v1361
    %v1364 = vtanh.pop %v1363
    %1366 = vrot.lane.b32.xlu0 %v1364, 64
    %v1367 = vpop.permute.xlu0 %1366
    %v1369 = vmul.f32 %v1351, %v1367
    %v1370 = vpack.c.bf16 %v1216, %v1216
    %1372 = vrot.lane.b32.xlu0 %v1370, 32
    %v1373 = vpop.permute.xlu0 %1372
    %v1375 = vsel %vm203, %v1373, 0
    %1377 = vmatprep.subr.bf16.mxu0 0
    %1378 = vmatpush1.bf16.msra.mxu0 0
    %1379 = vmatprep.subr.bf16.mxu0 0
    %1380 = vmatpush1.bf16.msra.mxu0 0
    %1381 = vmatprep.subr.bf16.mxu0 0
    %1382 = vmatpush1.bf16.msra.mxu0 0
    %1383 = vmatprep.subr.bf16.mxu0 0
    %1384 = vmatpush1.bf16.msra.mxu0 0
    %1385 = vmatprep.subr.bf16.mxu0 0
    %1386 = vmatpush1.bf16.msra.mxu0 0
    %1387 = vmatprep.subr.bf16.mxu0 0
    %1388 = vmatpush1.bf16.msra.mxu0 0
    %1389 = vmatprep.subr.bf16.mxu0 0
    %1390 = vmatpush1.bf16.msra.mxu0 %v200
    %1391 = vmatprep.subr.bf16.mxu0 0
    %1392 = vmatpush1.bf16.msra.mxu0 %v199
    %1393 = vmatprep.subr.bf16.mxu0 0
    %1394 = vmatpush2.bf16.msra.mxu0 0
    %1395 = vmatprep.subr.bf16.mxu0 0
    %1396 = vmatpush2.bf16.msra.mxu0 0
    %1397 = vmatprep.subr.bf16.mxu0 0
    %1398 = vmatpush2.bf16.msra.mxu0 0
    %1399 = vmatprep.subr.bf16.mxu0 0
    %1400 = vmatpush2.bf16.msra.mxu0 0
    %1401 = vmatprep.subr.bf16.mxu0 0
    %1402 = vmatpush2.bf16.msra.mxu0 0
    %1403 = vmatprep.subr.bf16.mxu0 0
    %1404 = vmatpush2.bf16.msra.mxu0 0
    %1405 = vmatprep.subr.bf16.mxu0 0
    %1406 = vmatpush2.bf16.msra.mxu0 0
    %1407 = vmatprep.subr.bf16.mxu0 0
    %1408 = vmatpush2.bf16.msra.mxu0 0
    %1409 = vmatprep.mubr.bf16.mxu0 0
    %1410 = vmatmul.mubr.bf16.gmra.mxu0 %v1375
    %v1411 = vpop.f32.mrf.mxu0
    %v1412 = vadd.f32 0.0, %v1411
    %v1413 = vpop.f32.mrf.mxu0
    %v1414 = vpop.f32.mrf.mxu0
    %v1415 = vpop.f32.mrf.mxu0
    %1416 = vdwg.mxu0
    %v1417 = vadd.f32 %v185, %v1412
    %v1418 = vxor.u32 %v1417, 2147483648
    %v1419 = vmul.f32 %v1418, 1.442695
    %v1420 = vpow.pop %v1419
    %v1421 = vadd.f32 %v1420, 1.0
    %v1422 = vrcp.pop %v1421
    %v1423 = vmul.f32 1.0, %v1422
    %v1424 = vtanh.pop %v1417
    %v1425 = vmul.f32 %v1423, %v1210
    %1427 = vrot.lane.b32.xlu0 %v1424, 64
    %v1428 = vpop.permute.xlu0 %1427
    %v1430 = vmul.f32 %v1423, %v1428
    %1432 = vrot.lane.b32.xlu0 %v1430, 32
    %v1433 = vpop.permute.xlu0 %1432
    %v1435 = vadd.f32 %v1425, %v1433
    %v1436 = vtanh.pop %v1435
    %1438 = vrot.lane.b32.xlu0 %v1436, 64
    %v1439 = vpop.permute.xlu0 %1438
    %v1441 = vmul.f32 %v1423, %v1439
    %1443 = vrot.lane.b32.xlu0 %v1216, 32
    %v1444 = vpop.permute.xlu0 %1443
    %1447 = vrot.lane.b32.xlu0 %v1293, 64
    %v1448 = vpop.permute.xlu0 %1447
    %v1450 = vsel %vm203, %v1444, %v1448
    %v1451 = vpack.c.bf16 %v1450, %v1450
    %v1453 = vsel %vm378, %v1451, 0
    %1455 = vmatprep.subr.bf16.mxu0 0
    %1456 = vmatpush1.bf16.msra.mxu0 0
    %1457 = vmatprep.subr.bf16.mxu0 0
    %1458 = vmatpush1.bf16.msra.mxu0 0
    %1459 = vmatprep.subr.bf16.mxu0 0
    %1460 = vmatpush1.bf16.msra.mxu0 0
    %1461 = vmatprep.subr.bf16.mxu0 0
    %1462 = vmatpush1.bf16.msra.mxu0 0
    %1463 = vmatprep.subr.bf16.mxu0 0
    %1464 = vmatpush1.bf16.msra.mxu0 %v373
    %1465 = vmatprep.subr.bf16.mxu0 0
    %1466 = vmatpush1.bf16.msra.mxu0 %v372
    %1467 = vmatprep.subr.bf16.mxu0 0
    %1468 = vmatpush1.bf16.msra.mxu0 %v371
    %1469 = vmatprep.subr.bf16.mxu0 0
    %1470 = vmatpush1.bf16.msra.mxu0 %v370
    %1471 = vmatprep.subr.bf16.mxu0 0
    %1472 = vmatpush2.bf16.msra.mxu0 0
    %1473 = vmatprep.subr.bf16.mxu0 0
    %1474 = vmatpush2.bf16.msra.mxu0 0
    %1475 = vmatprep.subr.bf16.mxu0 0
    %1476 = vmatpush2.bf16.msra.mxu0 0
    %1477 = vmatprep.subr.bf16.mxu0 0
    %1478 = vmatpush2.bf16.msra.mxu0 0
    %1479 = vmatprep.subr.bf16.mxu0 0
    %1480 = vmatpush2.bf16.msra.mxu0 0
    %1481 = vmatprep.subr.bf16.mxu0 0
    %1482 = vmatpush2.bf16.msra.mxu0 0
    %1483 = vmatprep.subr.bf16.mxu0 0
    %1484 = vmatpush2.bf16.msra.mxu0 0
    %1485 = vmatprep.subr.bf16.mxu0 0
    %1486 = vmatpush2.bf16.msra.mxu0 0
    %1487 = vmatprep.mubr.bf16.mxu0 0
    %1488 = vmatmul.mubr.bf16.gmra.mxu0 %v1453
    %v1489 = vpop.f32.mrf.mxu0
    %v1490 = vadd.f32 %v353, %v1489
    %v1491 = vpop.f32.mrf.mxu0
    %v1492 = vpop.f32.mrf.mxu0
    %v1493 = vpop.f32.mrf.mxu0
    %1494 = vdwg.mxu0
    %v1495 = vxor.u32 %v1490, 2147483648
    %v1496 = vmul.f32 %v1495, 1.442695
    %v1497 = vpow.pop %v1496
    %v1498 = vadd.f32 %v1497, 1.0
    %v1499 = vrcp.pop %v1498
    %v1500 = vmul.f32 1.0, %v1499
    %v1501 = vtanh.pop %v1490
    %v1502 = vmul.f32 %v1500, %v1287
    %1504 = vrot.lane.b32.xlu0 %v1501, 64
    %v1505 = vpop.permute.xlu0 %1504
    %v1507 = vmul.f32 %v1500, %v1505
    %1509 = vrot.lane.b32.xlu0 %v1507, 32
    %v1510 = vpop.permute.xlu0 %1509
    %v1512 = vadd.f32 %v1502, %v1510
    %v1513 = vtanh.pop %v1512
    %1515 = vrot.lane.b32.xlu0 %v1513, 64
    %v1516 = vpop.permute.xlu0 %1515
    %v1518 = vmul.f32 %v1500, %v1516
    %1519 = vrot.lane.b32.xlu0 %v1293, 32
    %v1520 = vpop.permute.xlu0 %1519
    %1523 = vrot.lane.b32.xlu0 %v1369, 64
    %v1524 = vpop.permute.xlu0 %1523
    %v1526 = vsel %vm203, %v1520, %v1524
    %v1527 = vpack.c.bf16 %v1526, %v1526
    %v1529 = vsel %vm378, %v1527, 0
    %1531 = vmatprep.subr.bf16.mxu0 0
    %1532 = vmatpush1.bf16.msra.mxu0 0
    %1533 = vmatprep.subr.bf16.mxu0 0
    %1534 = vmatpush1.bf16.msra.mxu0 0
    %1535 = vmatprep.subr.bf16.mxu0 0
    %1536 = vmatpush1.bf16.msra.mxu0 0
    %1537 = vmatprep.subr.bf16.mxu0 0
    %1538 = vmatpush1.bf16.msra.mxu0 0
    %1539 = vmatprep.subr.bf16.mxu0 0
    %1540 = vmatpush1.bf16.msra.mxu0 %v623
    %1541 = vmatprep.subr.bf16.mxu0 0
    %1542 = vmatpush1.bf16.msra.mxu0 %v622
    %1543 = vmatprep.subr.bf16.mxu0 0
    %1544 = vmatpush1.bf16.msra.mxu0 %v621
    %1545 = vmatprep.subr.bf16.mxu0 0
    %1546 = vmatpush1.bf16.msra.mxu0 %v620
    %1547 = vmatprep.subr.bf16.mxu0 0
    %1548 = vmatpush2.bf16.msra.mxu0 0
    %1549 = vmatprep.subr.bf16.mxu0 0
    %1550 = vmatpush2.bf16.msra.mxu0 0
    %1551 = vmatprep.subr.bf16.mxu0 0
    %1552 = vmatpush2.bf16.msra.mxu0 0
    %1553 = vmatprep.subr.bf16.mxu0 0
    %1554 = vmatpush2.bf16.msra.mxu0 0
    %1555 = vmatprep.subr.bf16.mxu0 0
    %1556 = vmatpush2.bf16.msra.mxu0 0
    %1557 = vmatprep.subr.bf16.mxu0 0
    %1558 = vmatpush2.bf16.msra.mxu0 0
    %1559 = vmatprep.subr.bf16.mxu0 0
    %1560 = vmatpush2.bf16.msra.mxu0 0
    %1561 = vmatprep.subr.bf16.mxu0 0
    %1562 = vmatpush2.bf16.msra.mxu0 0
    %1563 = vmatprep.mubr.bf16.mxu0 0
    %1564 = vmatmul.mubr.bf16.gmra.mxu0 %v1529
    %v1565 = vpop.f32.mrf.mxu0
    %v1566 = vadd.f32 %v603, %v1565
    %v1567 = vpop.f32.mrf.mxu0
    %v1568 = vpop.f32.mrf.mxu0
    %v1569 = vpop.f32.mrf.mxu0
    %1570 = vdwg.mxu0
    %v1571 = vxor.u32 %v1566, 2147483648
    %v1572 = vmul.f32 %v1571, 1.442695
    %v1573 = vpow.pop %v1572
    %v1574 = vadd.f32 %v1573, 1.0
    %v1575 = vrcp.pop %v1574
    %v1576 = vmul.f32 1.0, %v1575
    %v1577 = vtanh.pop %v1566
    %v1578 = vmul.f32 %v1576, %v1363
    %1580 = vrot.lane.b32.xlu0 %v1577, 64
    %v1581 = vpop.permute.xlu0 %1580
    %v1583 = vmul.f32 %v1576, %v1581
    %1585 = vrot.lane.b32.xlu0 %v1583, 32
    %v1586 = vpop.permute.xlu0 %1585
    %v1588 = vadd.f32 %v1578, %v1586
    %v1589 = vtanh.pop %v1588
    %1591 = vrot.lane.b32.xlu0 %v1589, 64
    %v1592 = vpop.permute.xlu0 %1591
    %v1594 = vmul.f32 %v1576, %v1592
    %v1595 = vpack.c.bf16 %v1441, %v1441
    %1597 = vrot.lane.b32.xlu0 %v1595, 32
    %v1598 = vpop.permute.xlu0 %1597
    %v1600 = vsel %vm203, %v1598, 0
    %1602 = vmatprep.subr.bf16.mxu0 0
    %1603 = vmatpush1.bf16.msra.mxu0 0
    %1604 = vmatprep.subr.bf16.mxu0 0
    %1605 = vmatpush1.bf16.msra.mxu0 0
    %1606 = vmatprep.subr.bf16.mxu0 0
    %1607 = vmatpush1.bf16.msra.mxu0 0
    %1608 = vmatprep.subr.bf16.mxu0 0
    %1609 = vmatpush1.bf16.msra.mxu0 0
    %1610 = vmatprep.subr.bf16.mxu0 0
    %1611 = vmatpush1.bf16.msra.mxu0 0
    %1612 = vmatprep.subr.bf16.mxu0 0
    %1613 = vmatpush1.bf16.msra.mxu0 0
    %1614 = vmatprep.subr.bf16.mxu0 0
    %1615 = vmatpush1.bf16.msra.mxu0 %v200
    %1616 = vmatprep.subr.bf16.mxu0 0
    %1617 = vmatpush1.bf16.msra.mxu0 %v199
    %1618 = vmatprep.subr.bf16.mxu0 0
    %1619 = vmatpush2.bf16.msra.mxu0 0
    %1620 = vmatprep.subr.bf16.mxu0 0
    %1621 = vmatpush2.bf16.msra.mxu0 0
    %1622 = vmatprep.subr.bf16.mxu0 0
    %1623 = vmatpush2.bf16.msra.mxu0 0
    %1624 = vmatprep.subr.bf16.mxu0 0
    %1625 = vmatpush2.bf16.msra.mxu0 0
    %1626 = vmatprep.subr.bf16.mxu0 0
    %1627 = vmatpush2.bf16.msra.mxu0 0
    %1628 = vmatprep.subr.bf16.mxu0 0
    %1629 = vmatpush2.bf16.msra.mxu0 0
    %1630 = vmatprep.subr.bf16.mxu0 0
    %1631 = vmatpush2.bf16.msra.mxu0 0
    %1632 = vmatprep.subr.bf16.mxu0 0
    %1633 = vmatpush2.bf16.msra.mxu0 0
    %1634 = vmatprep.mubr.bf16.mxu0 0
    %1635 = vmatmul.mubr.bf16.gmra.mxu0 %v1600
    %v1636 = vpop.f32.mrf.mxu0
    %v1637 = vadd.f32 0.0, %v1636
    %v1638 = vpop.f32.mrf.mxu0
    %v1639 = vpop.f32.mrf.mxu0
    %v1640 = vpop.f32.mrf.mxu0
    %1641 = vdwg.mxu0
    %v1642 = vadd.f32 %v188, %v1637
    %v1643 = vxor.u32 %v1642, 2147483648
    %v1644 = vmul.f32 %v1643, 1.442695
    %v1645 = vpow.pop %v1644
    %v1646 = vadd.f32 %v1645, 1.0
    %v1647 = vrcp.pop %v1646
    %v1648 = vmul.f32 1.0, %v1647
    %v1649 = vtanh.pop %v1642
    %v1650 = vmul.f32 %v1648, %v1435
    %1652 = vrot.lane.b32.xlu0 %v1649, 64
    %v1653 = vpop.permute.xlu0 %1652
    %v1655 = vmul.f32 %v1648, %v1653
    %1657 = vrot.lane.b32.xlu0 %v1655, 32
    %v1658 = vpop.permute.xlu0 %1657
    %v1660 = vadd.f32 %v1650, %v1658
    %v1661 = vtanh.pop %v1660
    %1663 = vrot.lane.b32.xlu0 %v1661, 64
    %v1664 = vpop.permute.xlu0 %1663
    %v1666 = vmul.f32 %v1648, %v1664
    %1668 = vrot.lane.b32.xlu0 %v1441, 32
    %v1669 = vpop.permute.xlu0 %1668
    %1672 = vrot.lane.b32.xlu0 %v1518, 64
    %v1673 = vpop.permute.xlu0 %1672
    %v1675 = vsel %vm203, %v1669, %v1673
    %v1676 = vpack.c.bf16 %v1675, %v1675
    %v1678 = vsel %vm378, %v1676, 0
    %1680 = vmatprep.subr.bf16.mxu0 0
    %1681 = vmatpush1.bf16.msra.mxu0 0
    %1682 = vmatprep.subr.bf16.mxu0 0
    %1683 = vmatpush1.bf16.msra.mxu0 0
    %1684 = vmatprep.subr.bf16.mxu0 0
    %1685 = vmatpush1.bf16.msra.mxu0 0
    %1686 = vmatprep.subr.bf16.mxu0 0
    %1687 = vmatpush1.bf16.msra.mxu0 0
    %1688 = vmatprep.subr.bf16.mxu0 0
    %1689 = vmatpush1.bf16.msra.mxu0 %v373
    %1690 = vmatprep.subr.bf16.mxu0 0
    %1691 = vmatpush1.bf16.msra.mxu0 %v372
    %1692 = vmatprep.subr.bf16.mxu0 0
    %1693 = vmatpush1.bf16.msra.mxu0 %v371
    %1694 = vmatprep.subr.bf16.mxu0 0
    %1695 = vmatpush1.bf16.msra.mxu0 %v370
    %1696 = vmatprep.subr.bf16.mxu0 0
    %1697 = vmatpush2.bf16.msra.mxu0 0
    %1698 = vmatprep.subr.bf16.mxu0 0
    %1699 = vmatpush2.bf16.msra.mxu0 0
    %1700 = vmatprep.subr.bf16.mxu0 0
    %1701 = vmatpush2.bf16.msra.mxu0 0
    %1702 = vmatprep.subr.bf16.mxu0 0
    %1703 = vmatpush2.bf16.msra.mxu0 0
    %1704 = vmatprep.subr.bf16.mxu0 0
    %1705 = vmatpush2.bf16.msra.mxu0 0
    %1706 = vmatprep.subr.bf16.mxu0 0
    %1707 = vmatpush2.bf16.msra.mxu0 0
    %1708 = vmatprep.subr.bf16.mxu0 0
    %1709 = vmatpush2.bf16.msra.mxu0 0
    %1710 = vmatprep.subr.bf16.mxu0 0
    %1711 = vmatpush2.bf16.msra.mxu0 0
    %1712 = vmatprep.mubr.bf16.mxu0 0
    %1713 = vmatmul.mubr.bf16.gmra.mxu0 %v1678
    %v1714 = vpop.f32.mrf.mxu0
    %v1715 = vadd.f32 %v353, %v1714
    %v1716 = vpop.f32.mrf.mxu0
    %v1717 = vpop.f32.mrf.mxu0
    %v1718 = vpop.f32.mrf.mxu0
    %1719 = vdwg.mxu0
    %v1720 = vxor.u32 %v1715, 2147483648
    %v1721 = vmul.f32 %v1720, 1.442695
    %v1722 = vpow.pop %v1721
    %v1723 = vadd.f32 %v1722, 1.0
    %v1724 = vrcp.pop %v1723
    %v1725 = vmul.f32 1.0, %v1724
    %v1726 = vtanh.pop %v1715
    %v1727 = vmul.f32 %v1725, %v1512
    %1729 = vrot.lane.b32.xlu0 %v1726, 64
    %v1730 = vpop.permute.xlu0 %1729
    %v1732 = vmul.f32 %v1725, %v1730
    %1734 = vrot.lane.b32.xlu0 %v1732, 32
    %v1735 = vpop.permute.xlu0 %1734
    %v1737 = vadd.f32 %v1727, %v1735
    %v1738 = vtanh.pop %v1737
    %1740 = vrot.lane.b32.xlu0 %v1738, 64
    %v1741 = vpop.permute.xlu0 %1740
    %v1743 = vmul.f32 %v1725, %v1741
    %1744 = vrot.lane.b32.xlu0 %v1518, 32
    %v1745 = vpop.permute.xlu0 %1744
    %1748 = vrot.lane.b32.xlu0 %v1594, 64
    %v1749 = vpop.permute.xlu0 %1748
    %v1751 = vsel %vm203, %v1745, %v1749
    %v1752 = vpack.c.bf16 %v1751, %v1751
    %v1754 = vsel %vm378, %v1752, 0
    %1756 = vmatprep.subr.bf16.mxu0 0
    %1757 = vmatpush1.bf16.msra.mxu0 0
    %1758 = vmatprep.subr.bf16.mxu0 0
    %1759 = vmatpush1.bf16.msra.mxu0 0
    %1760 = vmatprep.subr.bf16.mxu0 0
    %1761 = vmatpush1.bf16.msra.mxu0 0
    %1762 = vmatprep.subr.bf16.mxu0 0
    %1763 = vmatpush1.bf16.msra.mxu0 0
    %1764 = vmatprep.subr.bf16.mxu0 0
    %1765 = vmatpush1.bf16.msra.mxu0 %v623
    %1766 = vmatprep.subr.bf16.mxu0 0
    %1767 = vmatpush1.bf16.msra.mxu0 %v622
    %1768 = vmatprep.subr.bf16.mxu0 0
    %1769 = vmatpush1.bf16.msra.mxu0 %v621
    %1770 = vmatprep.subr.bf16.mxu0 0
    %1771 = vmatpush1.bf16.msra.mxu0 %v620
    %1772 = vmatprep.subr.bf16.mxu0 0
    %1773 = vmatpush2.bf16.msra.mxu0 0
    %1774 = vmatprep.subr.bf16.mxu0 0
    %1775 = vmatpush2.bf16.msra.mxu0 0
    %1776 = vmatprep.subr.bf16.mxu0 0
    %1777 = vmatpush2.bf16.msra.mxu0 0
    %1778 = vmatprep.subr.bf16.mxu0 0
    %1779 = vmatpush2.bf16.msra.mxu0 0
    %1780 = vmatprep.subr.bf16.mxu0 0
    %1781 = vmatpush2.bf16.msra.mxu0 0
    %1782 = vmatprep.subr.bf16.mxu0 0
    %1783 = vmatpush2.bf16.msra.mxu0 0
    %1784 = vmatprep.subr.bf16.mxu0 0
    %1785 = vmatpush2.bf16.msra.mxu0 0
    %1786 = vmatprep.subr.bf16.mxu0 0
    %1787 = vmatpush2.bf16.msra.mxu0 0
    %1788 = vmatprep.mubr.bf16.mxu0 0
    %1789 = vmatmul.mubr.bf16.gmra.mxu0 %v1754
    %v1790 = vpop.f32.mrf.mxu0
    %v1791 = vadd.f32 %v603, %v1790
    %v1792 = vpop.f32.mrf.mxu0
    %v1793 = vpop.f32.mrf.mxu0
    %v1794 = vpop.f32.mrf.mxu0
    %1795 = vdwg.mxu0
    %v1796 = vxor.u32 %v1791, 2147483648
    %v1797 = vmul.f32 %v1796, 1.442695
    %v1798 = vpow.pop %v1797
    %v1799 = vadd.f32 %v1798, 1.0
    %v1800 = vrcp.pop %v1799
    %v1801 = vmul.f32 1.0, %v1800
    %v1802 = vtanh.pop %v1791
    %v1803 = vmul.f32 %v1801, %v1588
    %1805 = vrot.lane.b32.xlu0 %v1802, 64
    %v1806 = vpop.permute.xlu0 %1805
    %v1808 = vmul.f32 %v1801, %v1806
    %1810 = vrot.lane.b32.xlu0 %v1808, 32
    %v1811 = vpop.permute.xlu0 %1810
    %v1813 = vadd.f32 %v1803, %v1811
    %v1814 = vtanh.pop %v1813
    %1816 = vrot.lane.b32.xlu0 %v1814, 64
    %v1817 = vpop.permute.xlu0 %1816
    %v1819 = vmul.f32 %v1801, %v1817
    %1821 = vrot.lane.b32.xlu0 %v1666, 32
    %v1822 = vpop.permute.xlu0 %1821
    %1825 = vrot.lane.b32.xlu0 %v1743, 64
    %v1826 = vpop.permute.xlu0 %1825
    %v1828 = vsel %vm203, %v1822, %v1826
    %v1829 = vpack.c.bf16 %v1828, %v1828
    %v1831 = vsel %vm378, %v1829, 0
    %1833 = vmatprep.subr.bf16.mxu0 0
    %1834 = vmatpush1.bf16.msra.mxu0 0
    %1835 = vmatprep.subr.bf16.mxu0 0
    %1836 = vmatpush1.bf16.msra.mxu0 0
    %1837 = vmatprep.subr.bf16.mxu0 0
    %1838 = vmatpush1.bf16.msra.mxu0 0
    %1839 = vmatprep.subr.bf16.mxu0 0
    %1840 = vmatpush1.bf16.msra.mxu0 0
    %1841 = vmatprep.subr.bf16.mxu0 0
    %1842 = vmatpush1.bf16.msra.mxu0 %v373
    %1843 = vmatprep.subr.bf16.mxu0 0
    %1844 = vmatpush1.bf16.msra.mxu0 %v372
    %1845 = vmatprep.subr.bf16.mxu0 0
    %1846 = vmatpush1.bf16.msra.mxu0 %v371
    %1847 = vmatprep.subr.bf16.mxu0 0
    %1848 = vmatpush1.bf16.msra.mxu0 %v370
    %1849 = vmatprep.subr.bf16.mxu0 0
    %1850 = vmatpush2.bf16.msra.mxu0 0
    %1851 = vmatprep.subr.bf16.mxu0 0
    %1852 = vmatpush2.bf16.msra.mxu0 0
    %1853 = vmatprep.subr.bf16.mxu0 0
    %1854 = vmatpush2.bf16.msra.mxu0 0
    %1855 = vmatprep.subr.bf16.mxu0 0
    %1856 = vmatpush2.bf16.msra.mxu0 0
    %1857 = vmatprep.subr.bf16.mxu0 0
    %1858 = vmatpush2.bf16.msra.mxu0 0
    %1859 = vmatprep.subr.bf16.mxu0 0
    %1860 = vmatpush2.bf16.msra.mxu0 0
    %1861 = vmatprep.subr.bf16.mxu0 0
    %1862 = vmatpush2.bf16.msra.mxu0 0
    %1863 = vmatprep.subr.bf16.mxu0 0
    %1864 = vmatpush2.bf16.msra.mxu0 0
    %1865 = vmatprep.mubr.bf16.mxu0 0
    %1866 = vmatmul.mubr.bf16.gmra.mxu0 %v1831
    %v1867 = vpop.f32.mrf.mxu0
    %v1868 = vadd.f32 %v353, %v1867
    %v1869 = vpop.f32.mrf.mxu0
    %v1870 = vpop.f32.mrf.mxu0
    %v1871 = vpop.f32.mrf.mxu0
    %1872 = vdwg.mxu0
    %v1873 = vxor.u32 %v1868, 2147483648
    %v1874 = vmul.f32 %v1873, 1.442695
    %v1875 = vpow.pop %v1874
    %v1876 = vadd.f32 %v1875, 1.0
    %v1877 = vrcp.pop %v1876
    %v1878 = vmul.f32 1.0, %v1877
    %v1879 = vtanh.pop %v1868
    %v1880 = vmul.f32 %v1878, %v1737
    %1882 = vrot.lane.b32.xlu0 %v1879, 64
    %v1883 = vpop.permute.xlu0 %1882
    %v1885 = vmul.f32 %v1878, %v1883
    %1887 = vrot.lane.b32.xlu0 %v1885, 32
    %v1888 = vpop.permute.xlu0 %1887
    %v1890 = vadd.f32 %v1880, %v1888
    %v1891 = vtanh.pop %v1890
    %1893 = vrot.lane.b32.xlu0 %v1891, 64
    %v1894 = vpop.permute.xlu0 %1893
    %v1896 = vmul.f32 %v1878, %v1894
    %1897 = vrot.lane.b32.xlu0 %v1743, 32
    %v1898 = vpop.permute.xlu0 %1897
    %1901 = vrot.lane.b32.xlu0 %v1819, 64
    %v1902 = vpop.permute.xlu0 %1901
    %v1904 = vsel %vm203, %v1898, %v1902
    %v1905 = vpack.c.bf16 %v1904, %v1904
    %v1907 = vsel %vm378, %v1905, 0
    %1909 = vmatprep.subr.bf16.mxu0 0
    %1910 = vmatpush1.bf16.msra.mxu0 0
    %1911 = vmatprep.subr.bf16.mxu0 0
    %1912 = vmatpush1.bf16.msra.mxu0 0
    %1913 = vmatprep.subr.bf16.mxu0 0
    %1914 = vmatpush1.bf16.msra.mxu0 0
    %1915 = vmatprep.subr.bf16.mxu0 0
    %1916 = vmatpush1.bf16.msra.mxu0 0
    %1917 = vmatprep.subr.bf16.mxu0 0
    %1918 = vmatpush1.bf16.msra.mxu0 %v623
    %1919 = vmatprep.subr.bf16.mxu0 0
    %1920 = vmatpush1.bf16.msra.mxu0 %v622
    %1921 = vmatprep.subr.bf16.mxu0 0
    %1922 = vmatpush1.bf16.msra.mxu0 %v621
    %1923 = vmatprep.subr.bf16.mxu0 0
    %1924 = vmatpush1.bf16.msra.mxu0 %v620
    %1925 = vmatprep.subr.bf16.mxu0 0
    %1926 = vmatpush2.bf16.msra.mxu0 0
    %1927 = vmatprep.subr.bf16.mxu0 0
    %1928 = vmatpush2.bf16.msra.mxu0 0
    %1929 = vmatprep.subr.bf16.mxu0 0
    %1930 = vmatpush2.bf16.msra.mxu0 0
    %1931 = vmatprep.subr.bf16.mxu0 0
    %1932 = vmatpush2.bf16.msra.mxu0 0
    %1933 = vmatprep.subr.bf16.mxu0 0
    %1934 = vmatpush2.bf16.msra.mxu0 0
    %1935 = vmatprep.subr.bf16.mxu0 0
    %1936 = vmatpush2.bf16.msra.mxu0 0
    %1937 = vmatprep.subr.bf16.mxu0 0
    %1938 = vmatpush2.bf16.msra.mxu0 0
    %1939 = vmatprep.subr.bf16.mxu0 0
    %1940 = vmatpush2.bf16.msra.mxu0 0
    %1941 = vmatprep.mubr.bf16.mxu0 0
    %1942 = vmatmul.mubr.bf16.gmra.mxu0 %v1907
    %v1943 = vpop.f32.mrf.mxu0
    %v1944 = vadd.f32 %v603, %v1943
    %v1945 = vpop.f32.mrf.mxu0
    %v1946 = vpop.f32.mrf.mxu0
    %v1947 = vpop.f32.mrf.mxu0
    %1948 = vdwg.mxu0
    %v1949 = vxor.u32 %v1944, 2147483648
    %v1950 = vmul.f32 %v1949, 1.442695
    %v1951 = vpow.pop %v1950
    %v1952 = vadd.f32 %v1951, 1.0
    %v1953 = vrcp.pop %v1952
    %v1954 = vmul.f32 1.0, %v1953
    %v1955 = vtanh.pop %v1944
    %v1956 = vmul.f32 %v1954, %v1813
    %1958 = vrot.lane.b32.xlu0 %v1955, 64
    %v1959 = vpop.permute.xlu0 %1958
    %v1961 = vmul.f32 %v1954, %v1959
    %1963 = vrot.lane.b32.xlu0 %v1961, 32
    %v1964 = vpop.permute.xlu0 %1963
    %v1966 = vadd.f32 %v1956, %v1964
    %v1967 = vtanh.pop %v1966
    %1969 = vrot.lane.b32.xlu0 %v1967, 64
    %v1970 = vpop.permute.xlu0 %1969
    %v1972 = vmul.f32 %v1954, %v1970
    %1974 = vrot.lane.b32.xlu0 %v1896, 32
    %v1975 = vpop.permute.xlu0 %1974
    %1978 = vrot.lane.b32.xlu0 %v1972, 64
    %v1979 = vpop.permute.xlu0 %1978
    %v1981 = vsel %vm203, %v1975, %v1979
    %v1982 = vpack.c.bf16 %v1981, %v1981
    %v1984 = vsel %vm378, %v1982, 0
    %1986 = vmatprep.subr.bf16.mxu0 0
    %1987 = vmatpush1.bf16.msra.mxu0 0
    %1988 = vmatprep.subr.bf16.mxu0 0
    %1989 = vmatpush1.bf16.msra.mxu0 0
    %1990 = vmatprep.subr.bf16.mxu0 0
    %1991 = vmatpush1.bf16.msra.mxu0 0
    %1992 = vmatprep.subr.bf16.mxu0 0
    %1993 = vmatpush1.bf16.msra.mxu0 0
    %1994 = vmatprep.subr.bf16.mxu0 0
    %1995 = vmatpush1.bf16.msra.mxu0 %v623
    %1996 = vmatprep.subr.bf16.mxu0 0
    %1997 = vmatpush1.bf16.msra.mxu0 %v622
    %1998 = vmatprep.subr.bf16.mxu0 0
    %1999 = vmatpush1.bf16.msra.mxu0 %v621
    %2000 = vmatprep.subr.bf16.mxu0 0
    %2001 = vmatpush1.bf16.msra.mxu0 %v620
    %2002 = vmatprep.subr.bf16.mxu0 0
    %2003 = vmatpush2.bf16.msra.mxu0 0
    %2004 = vmatprep.subr.bf16.mxu0 0
    %2005 = vmatpush2.bf16.msra.mxu0 0
    %2006 = vmatprep.subr.bf16.mxu0 0
    %2007 = vmatpush2.bf16.msra.mxu0 0
    %2008 = vmatprep.subr.bf16.mxu0 0
    %2009 = vmatpush2.bf16.msra.mxu0 0
    %2010 = vmatprep.subr.bf16.mxu0 0
    %2011 = vmatpush2.bf16.msra.mxu0 0
    %2012 = vmatprep.subr.bf16.mxu0 0
    %2013 = vmatpush2.bf16.msra.mxu0 0
    %2014 = vmatprep.subr.bf16.mxu0 0
    %2015 = vmatpush2.bf16.msra.mxu0 0
    %2016 = vmatprep.subr.bf16.mxu0 0
    %2017 = vmatpush2.bf16.msra.mxu0 0
    %2018 = vmatprep.mubr.bf16.mxu0 0
    %2019 = vmatmul.mubr.bf16.gmra.mxu0 %v1984
    %v2020 = vpop.f32.mrf.mxu0
    %v2021 = vadd.f32 %v603, %v2020
    %v2022 = vpop.f32.mrf.mxu0
    %v2023 = vpop.f32.mrf.mxu0
    %v2024 = vpop.f32.mrf.mxu0
    %2025 = vdwg.mxu0
    %v2026 = vxor.u32 %v2021, 2147483648
    %v2027 = vmul.f32 %v2026, 1.442695
    %v2028 = vpow.pop %v2027
    %v2029 = vadd.f32 %v2028, 1.0
    %v2030 = vrcp.pop %v2029
    %v2031 = vmul.f32 1.0, %v2030
    %v2032 = vtanh.pop %v2021
    %v2033 = vmul.f32 %v2031, %v1966
    %2035 = vrot.lane.b32.xlu0 %v2032, 64
    %v2036 = vpop.permute.xlu0 %2035
    %v2038 = vmul.f32 %v2031, %v2036
    %2040 = vrot.lane.b32.xlu0 %v2038, 32
    %v2041 = vpop.permute.xlu0 %2040
    %v2043 = vadd.f32 %v2033, %v2041
    %v2044 = vtanh.pop %v2043
    %2046 = vrot.lane.b32.xlu0 %v2044, 64
    %v2047 = vpop.permute.xlu0 %2046
    %v2049 = vmul.f32 %v2031, %v2047
    %v2050 = vld [vmem:[#allocation5] sm:$0xff]
    %v2051 = vld [vmem:[#allocation5 + $0x8] sm:$0xff]
    %v2052 = vld [vmem:[#allocation5 + $0x10] sm:$0xff]
    %v2053 = vld [vmem:[#allocation5 + $0x18] sm:$0xff]
    %v2054 = vld [vmem:[#allocation5 + $0x20] sm:$0xff]
    %v2055 = vld [vmem:[#allocation5 + $0x28] sm:$0xff]
    %v2056 = vld [vmem:[#allocation5 + $0x30] sm:$0xff]
    %v2057 = vld [vmem:[#allocation5 + $0x38] sm:$0xff]
    %v2058 = vld [vmem:[#allocation5 + $0x40] sm:$0xff]
    %v2059 = vld [vmem:[#allocation5 + $0x48] sm:$0xff]
    %v2060 = vld [vmem:[#allocation5 + $0x50] sm:$0xff]
    %v2061 = vld [vmem:[#allocation5 + $0x58] sm:$0xff]
    %v2062 = vld [vmem:[#allocation5 + $0x60] sm:$0xff]
    %v2063 = vld [vmem:[#allocation5 + $0x68] sm:$0xff]
    %v2064 = vld [vmem:[#allocation5 + $0x70] sm:$0xff]
    %v2065 = vld [vmem:[#allocation5 + $0x78] sm:$0xff]
    %v2066 = vld [vmem:[#allocation5 + $0x80] sm:$0xff]
    %v2067 = vld [vmem:[#allocation5 + $0x88] sm:$0xff]
    %v2068 = vld [vmem:[#allocation5 + $0x90] sm:$0xff]
    %v2069 = vld [vmem:[#allocation5 + $0x98] sm:$0xff]
    %v2070 = vld [vmem:[#allocation5 + $0xa0] sm:$0xff]
    %v2071 = vld [vmem:[#allocation5 + $0xa8] sm:$0xff]
    %v2072 = vld [vmem:[#allocation5 + $0xb0] sm:$0xff]
    %v2073 = vld [vmem:[#allocation5 + $0xb8] sm:$0xff]
    %v2074 = vld [vmem:[#allocation5 + $0xc0] sm:$0xff]
    %v2075 = vld [vmem:[#allocation5 + $0xc8] sm:$0xff]
    %v2076 = vld [vmem:[#allocation5 + $0xd0] sm:$0xff]
    %v2077 = vld [vmem:[#allocation5 + $0xd8] sm:$0xff]
    %v2078 = vld [vmem:[#allocation5 + $0xe0] sm:$0xff]
    %v2079 = vld [vmem:[#allocation5 + $0xe8] sm:$0xff]
    %v2080 = vld [vmem:[#allocation5 + $0xf0] sm:$0xff]
    %v2081 = vld [vmem:[#allocation5 + $0xf8] sm:$0xff]
    %v2082 = vld [vmem:[#allocation5 + $0x100] sm:$0xff]
    %v2083 = vld [vmem:[#allocation5 + $0x108] sm:$0xff]
    %v2084 = vld [vmem:[#allocation5 + $0x110] sm:$0xff]
    %v2085 = vld [vmem:[#allocation5 + $0x118] sm:$0xff]
    %v2086 = vld [vmem:[%s4] ss:$2 sm:$0x3]
    %s2087 = scalar_lea.vmem %s4, 1
    %v2088 = vld [vmem:[%s2087] ss:$2 sm:$0x3]
    %v2089 = vpack.c.bf16 %v2049, %v2049
    %v2091 = vlaneseq
    %v2092 = vshrl.u32 %v2091, 7
    %v2093 = vsub.s32 0, %v2092
    %v2094 = vrot.slane %v2086, %v2093
    %v2095 = vlaneseq
    %v2096 = vshrl.u32 %v2095, 7
    %v2097 = vsub.s32 1, %v2096
    %v2098 = vrot.slane %v2086, %v2097
    %2102 = vrot.lane.b32.xlu0 %v2089, 32
    %v2103 = vpop.permute.xlu0 %2102
    %v2108 = vunpack.c.l.b16 %v2050
    %v2109 = vunpack.c.h.b16 %v2050
    %v2110 = vunpack.c.l.b16 %v2051
    %v2111 = vunpack.c.h.b16 %v2051
    %v2112 = vunpack.c.l.b16 %v2052
    %v2113 = vunpack.c.h.b16 %v2052
    %v2114 = vunpack.c.l.b16 %v2053
    %v2115 = vunpack.c.h.b16 %v2053
    %v2116 = vpack.c.b16 %v2110, %v2108
    %v2117 = vpack.c.b16 %v2111, %v2109
    %v2118 = vpack.c.b16 %v2114, %v2112
    %v2119 = vpack.c.b16 %v2115, %v2113
    %v2125 = vsel %vm203, %v2103, 0
    %2127 = vmatprep.subr.bf16.mxu0 0
    %2128 = vmatpush1.bf16.msra.mxu0 0
    %2129 = vmatprep.subr.bf16.mxu0 0
    %2130 = vmatpush1.bf16.msra.mxu0 0
    %2131 = vmatprep.subr.bf16.mxu0 0
    %2132 = vmatpush1.bf16.msra.mxu0 0
    %2133 = vmatprep.subr.bf16.mxu0 0
    %2134 = vmatpush1.bf16.msra.mxu0 0
    %2135 = vmatprep.subr.bf16.mxu0 0
    %2136 = vmatpush1.bf16.msra.mxu0 0
    %2137 = vmatprep.subr.bf16.mxu0 0
    %2138 = vmatpush1.bf16.msra.mxu0 0
    %2139 = vmatprep.subr.bf16.mxu0 %v2119
    %2140 = vmatpush1.bf16.msra.mxu0 %v2118
    %2141 = vmatprep.subr.bf16.mxu0 %v2117
    %2142 = vmatpush1.bf16.msra.mxu0 %v2116
    %2143 = vmatprep.subr.bf16.mxu0 0
    %2144 = vmatpush2.bf16.msra.mxu0 0
    %2145 = vmatprep.subr.bf16.mxu0 0
    %2146 = vmatpush2.bf16.msra.mxu0 0
    %2147 = vmatprep.subr.bf16.mxu0 0
    %2148 = vmatpush2.bf16.msra.mxu0 0
    %2149 = vmatprep.subr.bf16.mxu0 0
    %2150 = vmatpush2.bf16.msra.mxu0 0
    %2151 = vmatprep.subr.bf16.mxu0 0
    %2152 = vmatpush2.bf16.msra.mxu0 0
    %2153 = vmatprep.subr.bf16.mxu0 0
    %2154 = vmatpush2.bf16.msra.mxu0 0
    %2155 = vmatprep.subr.bf16.mxu0 0
    %2156 = vmatpush2.bf16.msra.mxu0 0
    %2157 = vmatprep.subr.bf16.mxu0 0
    %2158 = vmatpush2.bf16.msra.mxu0 0
    %2159 = vmatprep.mubr.bf16.mxu0 0
    %2160 = vmatmul.mubr.bf16.gmra.mxu0 %v2125
    %v2161 = vpop.f32.mrf.mxu0
    %v2162 = vadd.f32 %v2094, %v2161
    %v2163 = vpop.f32.mrf.mxu0
    %v2164 = vadd.f32 %v2098, %v2163
    %v2165 = vpop.f32.mrf.mxu0
    %v2166 = vpop.f32.mrf.mxu0
    %2167 = vdwg.mxu0
    %v2168 = vmax.f32 %v2162, 0.0
    %v2169 = vmax.f32 %v2164, 0.0
    %v2170 = vpack.c.bf16 %v2168, %v2168
    %v2171 = vpack.c.bf16 %v2169, %v2169
    %v2173 = vlaneseq
    %v2174 = vshrl.u32 %v2173, 7
    %v2175 = vsub.s32 0, %v2174
    %v2176 = vrot.slane %v2088, %v2175
    %v2177 = vlaneseq
    %v2178 = vshrl.u32 %v2177, 7
    %v2179 = vsub.s32 1, %v2178
    %v2180 = vrot.slane %v2088, %v2179
    %v2215 = vunpack.c.l.b16 %v2054
    %v2216 = vunpack.c.h.b16 %v2054
    %v2217 = vunpack.c.l.b16 %v2055
    %v2218 = vunpack.c.h.b16 %v2055
    %v2219 = vunpack.c.l.b16 %v2056
    %v2220 = vunpack.c.h.b16 %v2056
    %v2221 = vunpack.c.l.b16 %v2057
    %v2222 = vunpack.c.h.b16 %v2057
    %v2223 = vunpack.c.l.b16 %v2058
    %v2224 = vunpack.c.h.b16 %v2058
    %v2225 = vunpack.c.l.b16 %v2059
    %v2226 = vunpack.c.h.b16 %v2059
    %v2227 = vunpack.c.l.b16 %v2060
    %v2228 = vunpack.c.h.b16 %v2060
    %v2229 = vunpack.c.l.b16 %v2061
    %v2230 = vunpack.c.h.b16 %v2061
    %v2231 = vunpack.c.l.b16 %v2062
    %v2232 = vunpack.c.h.b16 %v2062
    %v2233 = vunpack.c.l.b16 %v2063
    %v2234 = vunpack.c.h.b16 %v2063
    %v2235 = vunpack.c.l.b16 %v2064
    %v2236 = vunpack.c.h.b16 %v2064
    %v2237 = vunpack.c.l.b16 %v2065
    %v2238 = vunpack.c.h.b16 %v2065
    %v2239 = vunpack.c.l.b16 %v2066
    %v2240 = vunpack.c.h.b16 %v2066
    %v2241 = vunpack.c.l.b16 %v2067
    %v2242 = vunpack.c.h.b16 %v2067
    %v2243 = vunpack.c.l.b16 %v2068
    %v2244 = vunpack.c.h.b16 %v2068
    %v2245 = vunpack.c.l.b16 %v2069
    %v2246 = vunpack.c.h.b16 %v2069
    %v2247 = vunpack.c.l.b16 %v2070
    %v2248 = vunpack.c.h.b16 %v2070
    %v2249 = vunpack.c.l.b16 %v2071
    %v2250 = vunpack.c.h.b16 %v2071
    %v2251 = vunpack.c.l.b16 %v2072
    %v2252 = vunpack.c.h.b16 %v2072
    %v2253 = vunpack.c.l.b16 %v2073
    %v2254 = vunpack.c.h.b16 %v2073
    %v2255 = vunpack.c.l.b16 %v2074
    %v2256 = vunpack.c.h.b16 %v2074
    %v2257 = vunpack.c.l.b16 %v2075
    %v2258 = vunpack.c.h.b16 %v2075
    %v2259 = vunpack.c.l.b16 %v2076
    %v2260 = vunpack.c.h.b16 %v2076
    %v2261 = vunpack.c.l.b16 %v2077
    %v2262 = vunpack.c.h.b16 %v2077
    %v2263 = vunpack.c.l.b16 %v2078
    %v2264 = vunpack.c.h.b16 %v2078
    %v2265 = vunpack.c.l.b16 %v2079
    %v2266 = vunpack.c.h.b16 %v2079
    %v2267 = vunpack.c.l.b16 %v2080
    %v2268 = vunpack.c.h.b16 %v2080
    %v2269 = vunpack.c.l.b16 %v2081
    %v2270 = vunpack.c.h.b16 %v2081
    %v2271 = vunpack.c.l.b16 %v2082
    %v2272 = vunpack.c.h.b16 %v2082
    %v2273 = vunpack.c.l.b16 %v2083
    %v2274 = vunpack.c.h.b16 %v2083
    %v2275 = vunpack.c.l.b16 %v2084
    %v2276 = vunpack.c.h.b16 %v2084
    %v2277 = vunpack.c.l.b16 %v2085
    %v2278 = vunpack.c.h.b16 %v2085
    %v2279 = vpack.c.b16 %v2217, %v2215
    %v2280 = vpack.c.b16 %v2218, %v2216
    %v2281 = vpack.c.b16 %v2221, %v2219
    %v2282 = vpack.c.b16 %v2222, %v2220
    %v2283 = vpack.c.b16 %v2225, %v2223
    %v2284 = vpack.c.b16 %v2226, %v2224
    %v2285 = vpack.c.b16 %v2229, %v2227
    %v2286 = vpack.c.b16 %v2230, %v2228
    %v2287 = vpack.c.b16 %v2233, %v2231
    %v2288 = vpack.c.b16 %v2234, %v2232
    %v2289 = vpack.c.b16 %v2237, %v2235
    %v2290 = vpack.c.b16 %v2238, %v2236
    %v2291 = vpack.c.b16 %v2241, %v2239
    %v2292 = vpack.c.b16 %v2242, %v2240
    %v2293 = vpack.c.b16 %v2245, %v2243
    %v2294 = vpack.c.b16 %v2246, %v2244
    %v2295 = vpack.c.b16 %v2249, %v2247
    %v2296 = vpack.c.b16 %v2250, %v2248
    %v2297 = vpack.c.b16 %v2253, %v2251
    %v2298 = vpack.c.b16 %v2254, %v2252
    %v2299 = vpack.c.b16 %v2257, %v2255
    %v2300 = vpack.c.b16 %v2258, %v2256
    %v2301 = vpack.c.b16 %v2261, %v2259
    %v2302 = vpack.c.b16 %v2262, %v2260
    %v2303 = vpack.c.b16 %v2265, %v2263
    %v2304 = vpack.c.b16 %v2266, %v2264
    %v2305 = vpack.c.b16 %v2269, %v2267
    %v2306 = vpack.c.b16 %v2270, %v2268
    %v2307 = vpack.c.b16 %v2273, %v2271
    %v2308 = vpack.c.b16 %v2274, %v2272
    %v2309 = vpack.c.b16 %v2277, %v2275
    %v2310 = vpack.c.b16 %v2278, %v2276
    %2343 = vmatprep.subr.bf16.mxu0 %v2294
    %2344 = vmatpush1.bf16.msra.mxu0 %v2293
    %2345 = vmatprep.subr.bf16.mxu0 %v2292
    %2346 = vmatpush1.bf16.msra.mxu0 %v2291
    %2347 = vmatprep.subr.bf16.mxu0 %v2290
    %2348 = vmatpush1.bf16.msra.mxu0 %v2289
    %2349 = vmatprep.subr.bf16.mxu0 %v2288
    %2350 = vmatpush1.bf16.msra.mxu0 %v2287
    %2351 = vmatprep.subr.bf16.mxu0 %v2286
    %2352 = vmatpush1.bf16.msra.mxu0 %v2285
    %2353 = vmatprep.subr.bf16.mxu0 %v2284
    %2354 = vmatpush1.bf16.msra.mxu0 %v2283
    %2355 = vmatprep.subr.bf16.mxu0 %v2282
    %2356 = vmatpush1.bf16.msra.mxu0 %v2281
    %2357 = vmatprep.subr.bf16.mxu0 %v2280
    %2358 = vmatpush1.bf16.msra.mxu0 %v2279
    %2359 = vmatprep.subr.bf16.mxu0 %v2310
    %2360 = vmatpush2.bf16.msra.mxu0 %v2309
    %2361 = vmatprep.subr.bf16.mxu0 %v2308
    %2362 = vmatpush2.bf16.msra.mxu0 %v2307
    %2363 = vmatprep.subr.bf16.mxu0 %v2306
    %2364 = vmatpush2.bf16.msra.mxu0 %v2305
    %2365 = vmatprep.subr.bf16.mxu0 %v2304
    %2366 = vmatpush2.bf16.msra.mxu0 %v2303
    %2367 = vmatprep.subr.bf16.mxu0 %v2302
    %2368 = vmatpush2.bf16.msra.mxu0 %v2301
    %2369 = vmatprep.subr.bf16.mxu0 %v2300
    %2370 = vmatpush2.bf16.msra.mxu0 %v2299
    %2371 = vmatprep.subr.bf16.mxu0 %v2298
    %2372 = vmatpush2.bf16.msra.mxu0 %v2297
    %2373 = vmatprep.subr.bf16.mxu0 %v2296
    %2374 = vmatpush2.bf16.msra.mxu0 %v2295
    %2375 = vmatprep.mubr.bf16.mxu0 %v2171
    %2376 = vmatmul.mubr.bf16.gmra.mxu0 %v2170
    %v2377 = vpop.f32.mrf.mxu0
    %v2378 = vadd.f32 %v2176, %v2377
    %v2379 = vpop.f32.mrf.mxu0
    %v2380 = vadd.f32 %v2180, %v2379
    %v2381 = vpop.f32.mrf.mxu0
    %v2382 = vpop.f32.mrf.mxu0
    %2383 = vdwg.mxu0
    %v2384 = vmax.f32 %v2378, %v2380
    %2385 = vmax.xlane.f32.xlu0 %v2384
    %v2386 = vpop.xlane.xlu0 %2385
    %v2387 = vsub.f32 %v2378, %v2386
    %v2388 = vsub.f32 %v2380, %v2386
    %v2389 = vmul.f32 %v2387, 1.442695
    %v2390 = vpow.pop %v2389
    %v2391 = vmul.f32 %v2388, 1.442695
    %v2392 = vpow.pop %v2391
    %v2393 = vadd.f32 %v2390, %v2392
    %2394 = vadd.xlane.f32.xlu0 %v2393
    %v2395 = vpop.xlane.xlu0 %2394
    %v2396 = vrcp.pop %v2395
    %v2397 = vmul.f32 %v2390, %v2396
    %v2398 = vmul.f32 %v2392, %v2396
    %2399 = vst [vmem:[#allocation7] sm:$0xff] %v2397
    %2400 = vst [vmem:[#allocation7 + $0x8] sm:$0xff] %v2398
    // Predicated region
    $region30: #{tpu_custom_call.1} parent=1 // pred_check
      _
    $region31: #{tpu_custom_call.1} parent=1 // pred_check_branch
      %2402 = sbr.rel (0) target = $region33
    $region32: #{tpu_custom_call.1} parent=1 // pred_region
      %s2404 = ssub.s32 256, 256
      %2405 = vsyncadd [#allocation4], %s2404
      %s2407 = sshll.u32 [#allocation7], 4
      %s2408 = int_to_ptr.vmem [resolvable:$true] %s2407
      %2410 = dma.vmem_to_hbm [thread:$0]  %s2408, 256, %s5, [#allocation4]
    $region33: #{tpu_custom_call.1} parent=1 // pred_fallthru
      _
    // Predicated region
    $region34: #{tpu_custom_call.1} parent=1 // pred_check
      _
    $region35: #{tpu_custom_call.1} parent=1 // pred_check_branch
      %2412 = sbr.rel (0) target = $region37
    $region36: #{tpu_custom_call.1} parent=1 // pred_region
      %2413 = dma.done [#allocation4], 256
    $region37: #{tpu_custom_call.1} parent=1 // pred_fallthru
      _
    %2414 = vsyncpa [#allocation3], 1
    %2415 = vsyncpa [#allocation6], 1
    %2416 = vsyncpa [#allocation4], 1

</llo_original>
